<compile_context>
chip_gen: v6e
topology: v6e:2x2x1
jax: 0.10.0
libtpu: 0.0.40
codegen_flags: <defaults>
</compile_context>

<pallas_src>
import functools

import jax
import jax.numpy as jnp
from jax.experimental import pallas as pl
from jax.experimental.pallas import tpu as pltpu


def _shape_reg_kernel(x_ref, sel_ref, o_ref, *, inv_d):
    # x_ref:   (tile_s, C) block, C = D*f lanes (f logical rows per kernel row)
    # sel_ref: (C, f) block-diagonal selector of ones (column j selects the lanes
    #          belonging to logical row j inside each kernel row)
    # o_ref:   (tile_s, f) per-logical-row means
    x = x_ref[...].astype(jnp.float32)
    sq = x * x
    # Segmented lane reduction as a single MXU matmul; HIGHEST keeps f32 accuracy.
    acc = jnp.dot(
        sq,
        sel_ref[...],
        preferred_element_type=jnp.float32,
        precision=jax.lax.Precision.HIGHEST,
    )
    o_ref[...] = (acc * inv_d).astype(o_ref.dtype)


def _vmem_capacity_bytes():
    try:
        info = pltpu.get_tpu_info()
        cap = getattr(info, "vmem_capacity_bytes", None)
        if cap:
            return int(cap)
    except Exception:
        pass
    return 64 * 1024 * 1024  # conservative (v7x) fallback


def _is_v5e():
    try:
        kind = jax.devices()[0].device_kind.lower()
        return ("v5" in kind) and (("lite" in kind) or ("v5e" in kind))
    except Exception:
        return False


def shape_regularize(shape_out, *, target_block_bytes=8 * 1024 * 1024):
    """Pallas TPU equivalent of ShapeRegularize.forward: mean(shape_out**2, axis=2).

    shape_out: (B, N, D) float array.
    returns:   (B, N)
    """
    B, N, D = shape_out.shape
    R = B * N
    itemsize = jnp.dtype(shape_out.dtype).itemsize
    # Sublane packing multiple for the row-tile dim: 8 for f32, 16 for bf16, 32 for 8-bit.
    pack = 8 * max(1, 4 // itemsize)

    # ---- Fold factor f: pack f logical rows per kernel row ------------------
    # Target f ~ 128 so the output block is lane-dense.  Cap at 64 on v5e so the
    # HIGHEST-precision MXU passes don't flip it compute-bound, and cap so the
    # (C, f) selector stays <= ~4 MiB of VMEM.
    f_cap = 64 if _is_v5e() else 128
    sel_budget = 4 * 1024 * 1024
    f_cap = max(1, min(f_cap, int((sel_budget // (4 * max(1, D))) ** 0.5)))
    # Keep the folded row count >= 8 when possible (full sublane tiles).
    f_cap_eff = max(1, min(f_cap, max(R // 8, min(R, 8))))

    f = 1
    for cand in range(f_cap_eff, 0, -1):
        if R % cand == 0:
            f = cand
            break

    # No good divisor (near-prime R) on a large input: zero-pad a few rows
    # instead of degrading to a tiny fold (padded rows give masked/ignored outputs).
    pad_rows = 0
    if (f < f_cap_eff) and (2 * f <= f_cap_eff) and (R >= 8 * f_cap_eff):
        f = f_cap_eff
        pad_rows = (-R) % f

    R_pad = R + pad_rows
    C = D * f
    rows_k = R_pad // f
    row_bytes = C * itemsize

    # ---- Row-tile size & grid ------------------------------------------------
    if rows_k <= pack:
        # Tiny input: single full block (block shape == full array dims is legal).
        tile_s = rows_k
    else:
        # ~target_block_bytes of input per grid step, rounded to the sublane pack.
        tile_s_budget = max(pack, (target_block_bytes // max(1, row_bytes)) // pack * pack)
        # Never swallow the whole array in one step: keep >= ~4 blocks so
        # pipelining and v7x megacore sharding engage.
        min_blocks = 4
        tile_s_split = max(pack, (rows_k // min_blocks) // pack * pack)
        tile_s = min(tile_s_budget, tile_s_split)
    grid_r = pl.cdiv(rows_k, tile_s)
    # NOTE: when rows_k % tile_s != 0 the last block reads padded/garbage rows;
    # each output row depends only on its own input row and out-of-bounds output
    # rows are masked on writeback, so valid results are unaffected.

    # ---- Generation-aware VMEM limit ------------------------------------------
    # v5e/v6e: 128 MiB physical -> allow 96 MiB.  v7x: 64 MiB -> allow ~48 MiB.
    vmem_limit = int(min(96 * 1024 * 1024, (_vmem_capacity_bytes() * 3) // 4))

    # ---- Host-side prep --------------------------------------------------------
    x_flat = shape_out.reshape(R, D)
    if pad_rows:
        x_flat = jnp.pad(x_flat, ((0, pad_rows), (0, 0)))
    # Free, contiguous reshape: (R_pad, D) -> (rows_k, C).
    x2 = x_flat.reshape(rows_k, C)
    # Block-diagonal selector: sel[c, j] = 1.0 iff lane c belongs to group j.
    sel = (jnp.arange(C, dtype=jnp.int32)[:, None] // D
           == jnp.arange(f, dtype=jnp.int32)[None, :]).astype(jnp.float32)

    kernel = functools.partial(_shape_reg_kernel, inv_d=1.0 / D)

    out2 = pl.pallas_call(
        kernel,
        out_shape=jax.ShapeDtypeStruct((rows_k, f), shape_out.dtype),
        grid=(grid_r,),
        in_specs=[
            pl.BlockSpec((tile_s, C), lambda i: (i, 0)),
            pl.BlockSpec((C, f), lambda i: (0, 0)),  # constant block -> DMA'd once
        ],
        out_specs=pl.BlockSpec((tile_s, f), lambda i: (i, 0)),
        compiler_params=pltpu.CompilerParams(
            dimension_semantics=("parallel",),
            vmem_limit_bytes=vmem_limit,
        ),
        cost_estimate=pl.CostEstimate(
            flops=int(R_pad * D + 2 * rows_k * C * f),
            transcendentals=0,
            bytes_accessed=int(R_pad * D * itemsize + R_pad * itemsize + C * f * 4),
        ),
    )(x2, sel)

    # (rows_k, f) row-major == per-row means in original row order; drop padding.
    out_flat = out2.reshape(R_pad)
    if pad_rows:
        out_flat = out_flat[:R]
    return out_flat.reshape(B, N)


if __name__ == "__main__":
    key = jax.random.PRNGKey(0)
    B, N, D = 2, 64, 32          # (batch, num_shape_params, dim)
    x = jax.random.normal(key, (B, N, D), dtype=jnp.float32)

    out = jax.block_until_ready(shape_regularize(x))

    # reference check in plain JAX
    ref = jnp.mean(x ** 2, axis=2)
    assert out.shape == ref.shape == (B, N)
    assert jnp.allclose(out, ref, atol=1e-5, rtol=1e-5)

    print("KERNEL_OK")
</pallas_src>

<mosaic_0001>
module attributes {stable_mosaic.version = 11 : i64} {
  func.func @_shape_reg_kernel(%arg0: i32, %arg1: memref<8x512xf32, #tpu.memory_space<vmem>>, %arg2: memref<512x16xf32, #tpu.memory_space<vmem>>, %arg3: memref<8x16xf32, #tpu.memory_space<vmem>>) attributes {dimension_semantics = [#tpu.dimension_semantics<parallel>], iteration_bounds = array<i64: 1>, scalar_prefetch = 0 : i64, scratch_operands = 0 : i64, tpu.core_type = #tpu.core_type<tc>, window_params = [{transform_indices = @transform_0, window_bounds = array<i64: 8, 512>}, {pipeline_mode = #tpu.pipeline_mode<synchronous>, transform_indices = @transform_1, window_bounds = array<i64: 512, 16>}, {transform_indices = @transform_2, window_bounds = array<i64: 8, 16>}]} {
    %c0 = arith.constant 0 : index
    %c0_0 = arith.constant 0 : index
    %0 = vector.load %arg1[%c0, %c0_0] : memref<8x512xf32, #tpu.memory_space<vmem>>, vector<8x512xf32>
    %1 = arith.mulf %0, %0 : vector<8x512xf32>
    %c0_1 = arith.constant 0 : index
    %c0_2 = arith.constant 0 : index
    %2 = vector.load %arg2[%c0_1, %c0_2] : memref<512x16xf32, #tpu.memory_space<vmem>>, vector<512x16xf32>
    %cst = arith.constant dense<0.000000e+00> : vector<8x16xf32>
    %3 = tpu.matmul %1, %2, %cst {dimension_numbers = #tpu.dot_dimension_numbers<[1], [0], [0], [1], [0, 0, 1, 1], [], []>, precision = #tpu.contract_precision<fp32>} : vector<8x512xf32>, vector<512x16xf32>, vector<8x16xf32> -> vector<8x16xf32>
    %cst_3 = arith.constant 3.125000e-02 : f32
    %4 = vector.broadcast %cst_3 : f32 to vector<8x16xf32>
    %5 = arith.mulf %3, %4 : vector<8x16xf32>
    %c0_4 = arith.constant 0 : index
    %c0_5 = arith.constant 0 : index
    %6 = vector.load %arg3[%c0_4, %c0_5] : memref<8x16xf32, #tpu.memory_space<vmem>>, vector<8x16xf32>
    tpu.vector_store %arg3[%c0_4, %c0_5], %5 {strides = array<i32>} : memref<8x16xf32, #tpu.memory_space<vmem>>, vector<8x16xf32>,
    return
  }
  func.func @transform_0(%arg0: i32) -> (i32, i32) {
    %c0_i32 = arith.constant 0 : i32
    %c0_i32_0 = arith.constant 0 : i32
    return %arg0, %c0_i32 : i32, i32
  }
  func.func @transform_1(%arg0: i32) -> (i32, i32) {
    %c0_i32 = arith.constant 0 : i32
    %c0_i32_0 = arith.constant 0 : i32
    %c0_i32_1 = arith.constant 0 : i32
    return %c0_i32, %c0_i32_0 : i32, i32
  }
  func.func @transform_2(%arg0: i32) -> (i32, i32) {
    %c0_i32 = arith.constant 0 : i32
    %c0_i32_0 = arith.constant 0 : i32
    return %arg0, %c0_i32 : i32, i32
  }
}

</mosaic_0001>

<llo_original>
// kernel: tpu_custom_call.1
$region0: #{tpu_custom_call.1}
  #allocation0 [shape = 'u32[]', space=smem, size = 0x4, offset = 0x4, fixed_abs, tag = 'smem constant byte address 0x4 - core index']
  #allocation1 [shape = 'u32[144,128]{1,0:T(1,128)}', space=vmem, size = 0x12000, scoped, tag = 'internal scratch']
  %s0 = inlined_call_operand.vmem [shape: f32[8,512], index: 0, kind: input, shape index: {}]
  %s1 = inlined_call_operand.vmem [shape: f32[512,16], index: 1, kind: input, shape index: {}]
  %s2 = inlined_call_operand.hbm [shape: f32[8,16], index: 2, kind: output, shape index: {}]
  %s3 = sld [smem:[#allocation0]]
  $region18: #{tpu_custom_call.1} parent=0
    _
  %s5 = ssub.s32 1, %s3
  %s6 = scalar_select 0, %s5, %s3
  $region1: #{tpu_custom_call.1} parent=0
    #allocation2 [shape = 'u8[4096]{0}', space=vmem, size = 0x1000, scoped, tag = 'output window, operand 0, single buffered']
    #allocation3 [shape = 's32[1]{0}', space=sflag, size = 0x4, scoped, tag = 'scoped memory for tpu_custom_call.1']
    %7 = vsyncpa [#allocation3], 0
    // Predicated region
    $region2: #{tpu_custom_call.1} parent=1 // pred_check
      _
    $region3: #{tpu_custom_call.1} parent=1 // pred_check_branch
      %9 = sbr.rel (0) target = $region5
    $region4: #{tpu_custom_call.1} parent=1 // pred_region
      _
    $region5: #{tpu_custom_call.1} parent=1 // pred_fallthru
      _
    // Predicated region
    $region6: #{tpu_custom_call.1} parent=1 // pred_check
      _
    $region7: #{tpu_custom_call.1} parent=1 // pred_check_branch
      %11 = sbr.rel (0) target = $region9
    $region8: #{tpu_custom_call.1} parent=1 // pred_region
      _
    $region9: #{tpu_custom_call.1} parent=1 // pred_fallthru
      _
    %v12 = vld [vmem:[%s0] sm:$0xff]
    %v13 = vld [vmem:[%s0 + $0x8] sm:$0xff]
    %v14 = vld [vmem:[%s0 + $0x10] sm:$0xff]
    %v15 = vld [vmem:[%s0 + $0x18] sm:$0xff]
    %v16 = vmul.f32 %v12, %v12
    %v17 = vmul.f32 %v13, %v13
    %v18 = vmul.f32 %v14, %v14
    %v19 = vmul.f32 %v15, %v15
    %v20 = vld [vmem:[%s1] sm:$0xff]
    %v21 = vld [vmem:[%s1 + $0x8] sm:$0xff]
    %v22 = vld [vmem:[%s1 + $0x10] sm:$0xff]
    %v23 = vld [vmem:[%s1 + $0x18] sm:$0xff]
    %v24 = vld [vmem:[%s1 + $0x20] sm:$0xff]
    %v25 = vld [vmem:[%s1 + $0x28] sm:$0xff]
    %v26 = vld [vmem:[%s1 + $0x30] sm:$0xff]
    %v27 = vld [vmem:[%s1 + $0x38] sm:$0xff]
    %v28 = vld [vmem:[%s1 + $0x40] sm:$0xff]
    %v29 = vld [vmem:[%s1 + $0x48] sm:$0xff]
    %v30 = vld [vmem:[%s1 + $0x50] sm:$0xff]
    %v31 = vld [vmem:[%s1 + $0x58] sm:$0xff]
    %v32 = vld [vmem:[%s1 + $0x60] sm:$0xff]
    %v33 = vld [vmem:[%s1 + $0x68] sm:$0xff]
    %v34 = vld [vmem:[%s1 + $0x70] sm:$0xff]
    %v35 = vld [vmem:[%s1 + $0x78] sm:$0xff]
    %v36 = vld [vmem:[%s1 + $0x80] sm:$0xff]
    %v37 = vld [vmem:[%s1 + $0x88] sm:$0xff]
    %v38 = vld [vmem:[%s1 + $0x90] sm:$0xff]
    %v39 = vld [vmem:[%s1 + $0x98] sm:$0xff]
    %v40 = vld [vmem:[%s1 + $0xa0] sm:$0xff]
    %v41 = vld [vmem:[%s1 + $0xa8] sm:$0xff]
    %v42 = vld [vmem:[%s1 + $0xb0] sm:$0xff]
    %v43 = vld [vmem:[%s1 + $0xb8] sm:$0xff]
    %v44 = vld [vmem:[%s1 + $0xc0] sm:$0xff]
    %v45 = vld [vmem:[%s1 + $0xc8] sm:$0xff]
    %v46 = vld [vmem:[%s1 + $0xd0] sm:$0xff]
    %v47 = vld [vmem:[%s1 + $0xd8] sm:$0xff]
    %v48 = vld [vmem:[%s1 + $0xe0] sm:$0xff]
    %v49 = vld [vmem:[%s1 + $0xe8] sm:$0xff]
    %v50 = vld [vmem:[%s1 + $0xf0] sm:$0xff]
    %v51 = vld [vmem:[%s1 + $0xf8] sm:$0xff]
    %v52 = vld [vmem:[%s1 + $0x100] sm:$0xff]
    %v53 = vld [vmem:[%s1 + $0x108] sm:$0xff]
    %v54 = vld [vmem:[%s1 + $0x110] sm:$0xff]
    %v55 = vld [vmem:[%s1 + $0x118] sm:$0xff]
    %v56 = vld [vmem:[%s1 + $0x120] sm:$0xff]
    %v57 = vld [vmem:[%s1 + $0x128] sm:$0xff]
    %v58 = vld [vmem:[%s1 + $0x130] sm:$0xff]
    %v59 = vld [vmem:[%s1 + $0x138] sm:$0xff]
    %v60 = vld [vmem:[%s1 + $0x140] sm:$0xff]
    %v61 = vld [vmem:[%s1 + $0x148] sm:$0xff]
    %v62 = vld [vmem:[%s1 + $0x150] sm:$0xff]
    %v63 = vld [vmem:[%s1 + $0x158] sm:$0xff]
    %v64 = vld [vmem:[%s1 + $0x160] sm:$0xff]
    %v65 = vld [vmem:[%s1 + $0x168] sm:$0xff]
    %v66 = vld [vmem:[%s1 + $0x170] sm:$0xff]
    %v67 = vld [vmem:[%s1 + $0x178] sm:$0xff]
    %v68 = vld [vmem:[%s1 + $0x180] sm:$0xff]
    %v69 = vld [vmem:[%s1 + $0x188] sm:$0xff]
    %v70 = vld [vmem:[%s1 + $0x190] sm:$0xff]
    %v71 = vld [vmem:[%s1 + $0x198] sm:$0xff]
    %v72 = vld [vmem:[%s1 + $0x1a0] sm:$0xff]
    %v73 = vld [vmem:[%s1 + $0x1a8] sm:$0xff]
    %v74 = vld [vmem:[%s1 + $0x1b0] sm:$0xff]
    %v75 = vld [vmem:[%s1 + $0x1b8] sm:$0xff]
    %v76 = vld [vmem:[%s1 + $0x1c0] sm:$0xff]
    %v77 = vld [vmem:[%s1 + $0x1c8] sm:$0xff]
    %v78 = vld [vmem:[%s1 + $0x1d0] sm:$0xff]
    %v79 = vld [vmem:[%s1 + $0x1d8] sm:$0xff]
    %v80 = vld [vmem:[%s1 + $0x1e0] sm:$0xff]
    %v81 = vld [vmem:[%s1 + $0x1e8] sm:$0xff]
    %v82 = vld [vmem:[%s1 + $0x1f0] sm:$0xff]
    %v83 = vld [vmem:[%s1 + $0x1f8] sm:$0xff]
    %84 = vmatprep.subr.mxu0 0.0
    %v85 = vand.u32 %v35, 4294901760
    %86 = vmatpush1.msra.mxu0 %v85
    %87 = vmatprep.subr.mxu0 0.0
    %v88 = vand.u32 %v34, 4294901760
    %89 = vmatpush1.msra.mxu0 %v88
    %90 = vmatprep.subr.mxu0 0.0
    %v91 = vand.u32 %v33, 4294901760
    %92 = vmatpush1.msra.mxu0 %v91
    %93 = vmatprep.subr.mxu0 0.0
    %v94 = vand.u32 %v32, 4294901760
    %95 = vmatpush1.msra.mxu0 %v94
    %96 = vmatprep.subr.mxu0 0.0
    %v97 = vand.u32 %v31, 4294901760
    %98 = vmatpush1.msra.mxu0 %v97
    %99 = vmatprep.subr.mxu0 0.0
    %v100 = vand.u32 %v30, 4294901760
    %101 = vmatpush1.msra.mxu0 %v100
    %102 = vmatprep.subr.mxu0 0.0
    %v103 = vand.u32 %v29, 4294901760
    %104 = vmatpush1.msra.mxu0 %v103
    %105 = vmatprep.subr.mxu0 0.0
    %v106 = vand.u32 %v28, 4294901760
    %107 = vmatpush1.msra.mxu0 %v106
    %108 = vmatprep.subr.mxu0 0.0
    %v109 = vand.u32 %v27, 4294901760
    %110 = vmatpush1.msra.mxu0 %v109
    %111 = vmatprep.subr.mxu0 0.0
    %v112 = vand.u32 %v26, 4294901760
    %113 = vmatpush1.msra.mxu0 %v112
    %114 = vmatprep.subr.mxu0 0.0
    %v115 = vand.u32 %v25, 4294901760
    %116 = vmatpush1.msra.mxu0 %v115
    %117 = vmatprep.subr.mxu0 0.0
    %v118 = vand.u32 %v24, 4294901760
    %119 = vmatpush1.msra.mxu0 %v118
    %120 = vmatprep.subr.mxu0 0.0
    %v121 = vand.u32 %v23, 4294901760
    %122 = vmatpush1.msra.mxu0 %v121
    %123 = vmatprep.subr.mxu0 0.0
    %v124 = vand.u32 %v22, 4294901760
    %125 = vmatpush1.msra.mxu0 %v124
    %126 = vmatprep.subr.mxu0 0.0
    %v127 = vand.u32 %v21, 4294901760
    %128 = vmatpush1.msra.mxu0 %v127
    %129 = vmatprep.subr.mxu0 0.0
    %v130 = vand.u32 %v20, 4294901760
    %131 = vmatpush1.msra.mxu0 %v130
    %132 = vmatprep.subr.mxu0 0.0
    %v133 = vand.u32 %v51, 4294901760
    %134 = vmatpush2.msra.mxu0 %v133
    %135 = vmatprep.subr.mxu0 0.0
    %v136 = vand.u32 %v50, 4294901760
    %137 = vmatpush2.msra.mxu0 %v136
    %138 = vmatprep.subr.mxu0 0.0
    %v139 = vand.u32 %v49, 4294901760
    %140 = vmatpush2.msra.mxu0 %v139
    %141 = vmatprep.subr.mxu0 0.0
    %v142 = vand.u32 %v48, 4294901760
    %143 = vmatpush2.msra.mxu0 %v142
    %144 = vmatprep.subr.mxu0 0.0
    %v145 = vand.u32 %v47, 4294901760
    %146 = vmatpush2.msra.mxu0 %v145
    %147 = vmatprep.subr.mxu0 0.0
    %v148 = vand.u32 %v46, 4294901760
    %149 = vmatpush2.msra.mxu0 %v148
    %150 = vmatprep.subr.mxu0 0.0
    %v151 = vand.u32 %v45, 4294901760
    %152 = vmatpush2.msra.mxu0 %v151
    %153 = vmatprep.subr.mxu0 0.0
    %v154 = vand.u32 %v44, 4294901760
    %155 = vmatpush2.msra.mxu0 %v154
    %156 = vmatprep.subr.mxu0 0.0
    %v157 = vand.u32 %v43, 4294901760
    %158 = vmatpush2.msra.mxu0 %v157
    %159 = vmatprep.subr.mxu0 0.0
    %v160 = vand.u32 %v42, 4294901760
    %161 = vmatpush2.msra.mxu0 %v160
    %162 = vmatprep.subr.mxu0 0.0
    %v163 = vand.u32 %v41, 4294901760
    %164 = vmatpush2.msra.mxu0 %v163
    %165 = vmatprep.subr.mxu0 0.0
    %v166 = vand.u32 %v40, 4294901760
    %167 = vmatpush2.msra.mxu0 %v166
    %168 = vmatprep.subr.mxu0 0.0
    %v169 = vand.u32 %v39, 4294901760
    %170 = vmatpush2.msra.mxu0 %v169
    %171 = vmatprep.subr.mxu0 0.0
    %v172 = vand.u32 %v38, 4294901760
    %173 = vmatpush2.msra.mxu0 %v172
    %174 = vmatprep.subr.mxu0 0.0
    %v175 = vand.u32 %v37, 4294901760
    %176 = vmatpush2.msra.mxu0 %v175
    %177 = vmatprep.subr.mxu0 0.0
    %v178 = vand.u32 %v36, 4294901760
    %179 = vmatpush2.msra.mxu0 %v178
    %v180 = vand.u32 %v17, 4294901760
    %v181 = vsub.f32 %v17, %v180
    %v182 = vand.u32 %v181, 4294901760
    %v183 = vsub.f32 %v181, %v182
    %v184 = vand.u32 %v183, 4294901760
    %185 = vmatprep.mubr.f32.mxu0 %v184
    %v186 = vand.u32 %v16, 4294901760
    %v187 = vsub.f32 %v16, %v186
    %v188 = vand.u32 %v187, 4294901760
    %v189 = vsub.f32 %v187, %v188
    %v190 = vand.u32 %v189, 4294901760
    %191 = vmatmul.mubr.f32.gmra.mxu0 %v190
    %v192 = vpop.f32.mrf.mxu0
    %v193 = vadd.f32 0.0, %v192
    %v194 = vpop.f32.mrf.mxu0
    %195 = vdwg.mxu0
    %196 = vmatprep.subr.mxu0 0.0
    %v197 = vand.u32 %v35, 4294901760
    %v198 = vsub.f32 %v35, %v197
    %v199 = vand.u32 %v198, 4294901760
    %v200 = vsub.f32 %v198, %v199
    %v201 = vand.u32 %v200, 4294901760
    %202 = vmatpush1.msra.mxu0 %v201
    %203 = vmatprep.subr.mxu0 0.0
    %v204 = vand.u32 %v34, 4294901760
    %v205 = vsub.f32 %v34, %v204
    %v206 = vand.u32 %v205, 4294901760
    %v207 = vsub.f32 %v205, %v206
    %v208 = vand.u32 %v207, 4294901760
    %209 = vmatpush1.msra.mxu0 %v208
    %210 = vmatprep.subr.mxu0 0.0
    %v211 = vand.u32 %v33, 4294901760
    %v212 = vsub.f32 %v33, %v211
    %v213 = vand.u32 %v212, 4294901760
    %v214 = vsub.f32 %v212, %v213
    %v215 = vand.u32 %v214, 4294901760
    %216 = vmatpush1.msra.mxu0 %v215
    %217 = vmatprep.subr.mxu0 0.0
    %v218 = vand.u32 %v32, 4294901760
    %v219 = vsub.f32 %v32, %v218
    %v220 = vand.u32 %v219, 4294901760
    %v221 = vsub.f32 %v219, %v220
    %v222 = vand.u32 %v221, 4294901760
    %223 = vmatpush1.msra.mxu0 %v222
    %224 = vmatprep.subr.mxu0 0.0
    %v225 = vand.u32 %v31, 4294901760
    %v226 = vsub.f32 %v31, %v225
    %v227 = vand.u32 %v226, 4294901760
    %v228 = vsub.f32 %v226, %v227
    %v229 = vand.u32 %v228, 4294901760
    %230 = vmatpush1.msra.mxu0 %v229
    %231 = vmatprep.subr.mxu0 0.0
    %v232 = vand.u32 %v30, 4294901760
    %v233 = vsub.f32 %v30, %v232
    %v234 = vand.u32 %v233, 4294901760
    %v235 = vsub.f32 %v233, %v234
    %v236 = vand.u32 %v235, 4294901760
    %237 = vmatpush1.msra.mxu0 %v236
    %238 = vmatprep.subr.mxu0 0.0
    %v239 = vand.u32 %v29, 4294901760
    %v240 = vsub.f32 %v29, %v239
    %v241 = vand.u32 %v240, 4294901760
    %v242 = vsub.f32 %v240, %v241
    %v243 = vand.u32 %v242, 4294901760
    %244 = vmatpush1.msra.mxu0 %v243
    %245 = vmatprep.subr.mxu0 0.0
    %v246 = vand.u32 %v28, 4294901760
    %v247 = vsub.f32 %v28, %v246
    %v248 = vand.u32 %v247, 4294901760
    %v249 = vsub.f32 %v247, %v248
    %v250 = vand.u32 %v249, 4294901760
    %251 = vmatpush1.msra.mxu0 %v250
    %252 = vmatprep.subr.mxu0 0.0
    %v253 = vand.u32 %v27, 4294901760
    %v254 = vsub.f32 %v27, %v253
    %v255 = vand.u32 %v254, 4294901760
    %v256 = vsub.f32 %v254, %v255
    %v257 = vand.u32 %v256, 4294901760
    %258 = vmatpush1.msra.mxu0 %v257
    %259 = vmatprep.subr.mxu0 0.0
    %v260 = vand.u32 %v26, 4294901760
    %v261 = vsub.f32 %v26, %v260
    %v262 = vand.u32 %v261, 4294901760
    %v263 = vsub.f32 %v261, %v262
    %v264 = vand.u32 %v263, 4294901760
    %265 = vmatpush1.msra.mxu0 %v264
    %266 = vmatprep.subr.mxu0 0.0
    %v267 = vand.u32 %v25, 4294901760
    %v268 = vsub.f32 %v25, %v267
    %v269 = vand.u32 %v268, 4294901760
    %v270 = vsub.f32 %v268, %v269
    %v271 = vand.u32 %v270, 4294901760
    %272 = vmatpush1.msra.mxu0 %v271
    %273 = vmatprep.subr.mxu0 0.0
    %v274 = vand.u32 %v24, 4294901760
    %v275 = vsub.f32 %v24, %v274
    %v276 = vand.u32 %v275, 4294901760
    %v277 = vsub.f32 %v275, %v276
    %v278 = vand.u32 %v277, 4294901760
    %279 = vmatpush1.msra.mxu0 %v278
    %280 = vmatprep.subr.mxu0 0.0
    %v281 = vand.u32 %v23, 4294901760
    %v282 = vsub.f32 %v23, %v281
    %v283 = vand.u32 %v282, 4294901760
    %v284 = vsub.f32 %v282, %v283
    %v285 = vand.u32 %v284, 4294901760
    %286 = vmatpush1.msra.mxu0 %v285
    %287 = vmatprep.subr.mxu0 0.0
    %v288 = vand.u32 %v22, 4294901760
    %v289 = vsub.f32 %v22, %v288
    %v290 = vand.u32 %v289, 4294901760
    %v291 = vsub.f32 %v289, %v290
    %v292 = vand.u32 %v291, 4294901760
    %293 = vmatpush1.msra.mxu0 %v292
    %294 = vmatprep.subr.mxu0 0.0
    %v295 = vand.u32 %v21, 4294901760
    %v296 = vsub.f32 %v21, %v295
    %v297 = vand.u32 %v296, 4294901760
    %v298 = vsub.f32 %v296, %v297
    %v299 = vand.u32 %v298, 4294901760
    %300 = vmatpush1.msra.mxu0 %v299
    %301 = vmatprep.subr.mxu0 0.0
    %v302 = vand.u32 %v20, 4294901760
    %v303 = vsub.f32 %v20, %v302
    %v304 = vand.u32 %v303, 4294901760
    %v305 = vsub.f32 %v303, %v304
    %v306 = vand.u32 %v305, 4294901760
    %307 = vmatpush1.msra.mxu0 %v306
    %308 = vmatprep.subr.mxu0 0.0
    %v309 = vand.u32 %v51, 4294901760
    %v310 = vsub.f32 %v51, %v309
    %v311 = vand.u32 %v310, 4294901760
    %v312 = vsub.f32 %v310, %v311
    %v313 = vand.u32 %v312, 4294901760
    %314 = vmatpush2.msra.mxu0 %v313
    %315 = vmatprep.subr.mxu0 0.0
    %v316 = vand.u32 %v50, 4294901760
    %v317 = vsub.f32 %v50, %v316
    %v318 = vand.u32 %v317, 4294901760
    %v319 = vsub.f32 %v317, %v318
    %v320 = vand.u32 %v319, 4294901760
    %321 = vmatpush2.msra.mxu0 %v320
    %322 = vmatprep.subr.mxu0 0.0
    %v323 = vand.u32 %v49, 4294901760
    %v324 = vsub.f32 %v49, %v323
    %v325 = vand.u32 %v324, 4294901760
    %v326 = vsub.f32 %v324, %v325
    %v327 = vand.u32 %v326, 4294901760
    %328 = vmatpush2.msra.mxu0 %v327
    %329 = vmatprep.subr.mxu0 0.0
    %v330 = vand.u32 %v48, 4294901760
    %v331 = vsub.f32 %v48, %v330
    %v332 = vand.u32 %v331, 4294901760
    %v333 = vsub.f32 %v331, %v332
    %v334 = vand.u32 %v333, 4294901760
    %335 = vmatpush2.msra.mxu0 %v334
    %336 = vmatprep.subr.mxu0 0.0
    %v337 = vand.u32 %v47, 4294901760
    %v338 = vsub.f32 %v47, %v337
    %v339 = vand.u32 %v338, 4294901760
    %v340 = vsub.f32 %v338, %v339
    %v341 = vand.u32 %v340, 4294901760
    %342 = vmatpush2.msra.mxu0 %v341
    %343 = vmatprep.subr.mxu0 0.0
    %v344 = vand.u32 %v46, 4294901760
    %v345 = vsub.f32 %v46, %v344
    %v346 = vand.u32 %v345, 4294901760
    %v347 = vsub.f32 %v345, %v346
    %v348 = vand.u32 %v347, 4294901760
    %349 = vmatpush2.msra.mxu0 %v348
    %350 = vmatprep.subr.mxu0 0.0
    %v351 = vand.u32 %v45, 4294901760
    %v352 = vsub.f32 %v45, %v351
    %v353 = vand.u32 %v352, 4294901760
    %v354 = vsub.f32 %v352, %v353
    %v355 = vand.u32 %v354, 4294901760
    %356 = vmatpush2.msra.mxu0 %v355
    %357 = vmatprep.subr.mxu0 0.0
    %v358 = vand.u32 %v44, 4294901760
    %v359 = vsub.f32 %v44, %v358
    %v360 = vand.u32 %v359, 4294901760
    %v361 = vsub.f32 %v359, %v360
    %v362 = vand.u32 %v361, 4294901760
    %363 = vmatpush2.msra.mxu0 %v362
    %364 = vmatprep.subr.mxu0 0.0
    %v365 = vand.u32 %v43, 4294901760
    %v366 = vsub.f32 %v43, %v365
    %v367 = vand.u32 %v366, 4294901760
    %v368 = vsub.f32 %v366, %v367
    %v369 = vand.u32 %v368, 4294901760
    %370 = vmatpush2.msra.mxu0 %v369
    %371 = vmatprep.subr.mxu0 0.0
    %v372 = vand.u32 %v42, 4294901760
    %v373 = vsub.f32 %v42, %v372
    %v374 = vand.u32 %v373, 4294901760
    %v375 = vsub.f32 %v373, %v374
    %v376 = vand.u32 %v375, 4294901760
    %377 = vmatpush2.msra.mxu0 %v376
    %378 = vmatprep.subr.mxu0 0.0
    %v379 = vand.u32 %v41, 4294901760
    %v380 = vsub.f32 %v41, %v379
    %v381 = vand.u32 %v380, 4294901760
    %v382 = vsub.f32 %v380, %v381
    %v383 = vand.u32 %v382, 4294901760
    %384 = vmatpush2.msra.mxu0 %v383
    %385 = vmatprep.subr.mxu0 0.0
    %v386 = vand.u32 %v40, 4294901760
    %v387 = vsub.f32 %v40, %v386
    %v388 = vand.u32 %v387, 4294901760
    %v389 = vsub.f32 %v387, %v388
    %v390 = vand.u32 %v389, 4294901760
    %391 = vmatpush2.msra.mxu0 %v390
    %392 = vmatprep.subr.mxu0 0.0
    %v393 = vand.u32 %v39, 4294901760
    %v394 = vsub.f32 %v39, %v393
    %v395 = vand.u32 %v394, 4294901760
    %v396 = vsub.f32 %v394, %v395
    %v397 = vand.u32 %v396, 4294901760
    %398 = vmatpush2.msra.mxu0 %v397
    %399 = vmatprep.subr.mxu0 0.0
    %v400 = vand.u32 %v38, 4294901760
    %v401 = vsub.f32 %v38, %v400
    %v402 = vand.u32 %v401, 4294901760
    %v403 = vsub.f32 %v401, %v402
    %v404 = vand.u32 %v403, 4294901760
    %405 = vmatpush2.msra.mxu0 %v404
    %406 = vmatprep.subr.mxu0 0.0
    %v407 = vand.u32 %v37, 4294901760
    %v408 = vsub.f32 %v37, %v407
    %v409 = vand.u32 %v408, 4294901760
    %v410 = vsub.f32 %v408, %v409
    %v411 = vand.u32 %v410, 4294901760
    %412 = vmatpush2.msra.mxu0 %v411
    %413 = vmatprep.subr.mxu0 0.0
    %v414 = vand.u32 %v36, 4294901760
    %v415 = vsub.f32 %v36, %v414
    %v416 = vand.u32 %v415, 4294901760
    %v417 = vsub.f32 %v415, %v416
    %v418 = vand.u32 %v417, 4294901760
    %419 = vmatpush2.msra.mxu0 %v418
    %v420 = vand.u32 %v17, 4294901760
    %421 = vmatprep.mubr.f32.mxu0 %v420
    %v422 = vand.u32 %v16, 4294901760
    %423 = vmatmul.mubr.f32.gmra.mxu0 %v422
    %v424 = vpop.f32.mrf.mxu0
    %v425 = vadd.f32 %v193, %v424
    %v426 = vpop.f32.mrf.mxu0
    %427 = vdwg.mxu0
    %428 = vmatprep.subr.mxu0 0.0
    %v429 = vand.u32 %v35, 4294901760
    %v430 = vsub.f32 %v35, %v429
    %431 = vmatpush1.msra.mxu0 %v430
    %432 = vmatprep.subr.mxu0 0.0
    %v433 = vand.u32 %v34, 4294901760
    %v434 = vsub.f32 %v34, %v433
    %435 = vmatpush1.msra.mxu0 %v434
    %436 = vmatprep.subr.mxu0 0.0
    %v437 = vand.u32 %v33, 4294901760
    %v438 = vsub.f32 %v33, %v437
    %439 = vmatpush1.msra.mxu0 %v438
    %440 = vmatprep.subr.mxu0 0.0
    %v441 = vand.u32 %v32, 4294901760
    %v442 = vsub.f32 %v32, %v441
    %443 = vmatpush1.msra.mxu0 %v442
    %444 = vmatprep.subr.mxu0 0.0
    %v445 = vand.u32 %v31, 4294901760
    %v446 = vsub.f32 %v31, %v445
    %447 = vmatpush1.msra.mxu0 %v446
    %448 = vmatprep.subr.mxu0 0.0
    %v449 = vand.u32 %v30, 4294901760
    %v450 = vsub.f32 %v30, %v449
    %451 = vmatpush1.msra.mxu0 %v450
    %452 = vmatprep.subr.mxu0 0.0
    %v453 = vand.u32 %v29, 4294901760
    %v454 = vsub.f32 %v29, %v453
    %455 = vmatpush1.msra.mxu0 %v454
    %456 = vmatprep.subr.mxu0 0.0
    %v457 = vand.u32 %v28, 4294901760
    %v458 = vsub.f32 %v28, %v457
    %459 = vmatpush1.msra.mxu0 %v458
    %460 = vmatprep.subr.mxu0 0.0
    %v461 = vand.u32 %v27, 4294901760
    %v462 = vsub.f32 %v27, %v461
    %463 = vmatpush1.msra.mxu0 %v462
    %464 = vmatprep.subr.mxu0 0.0
    %v465 = vand.u32 %v26, 4294901760
    %v466 = vsub.f32 %v26, %v465
    %467 = vmatpush1.msra.mxu0 %v466
    %468 = vmatprep.subr.mxu0 0.0
    %v469 = vand.u32 %v25, 4294901760
    %v470 = vsub.f32 %v25, %v469
    %471 = vmatpush1.msra.mxu0 %v470
    %472 = vmatprep.subr.mxu0 0.0
    %v473 = vand.u32 %v24, 4294901760
    %v474 = vsub.f32 %v24, %v473
    %475 = vmatpush1.msra.mxu0 %v474
    %476 = vmatprep.subr.mxu0 0.0
    %v477 = vand.u32 %v23, 4294901760
    %v478 = vsub.f32 %v23, %v477
    %479 = vmatpush1.msra.mxu0 %v478
    %480 = vmatprep.subr.mxu0 0.0
    %v481 = vand.u32 %v22, 4294901760
    %v482 = vsub.f32 %v22, %v481
    %483 = vmatpush1.msra.mxu0 %v482
    %484 = vmatprep.subr.mxu0 0.0
    %v485 = vand.u32 %v21, 4294901760
    %v486 = vsub.f32 %v21, %v485
    %487 = vmatpush1.msra.mxu0 %v486
    %488 = vmatprep.subr.mxu0 0.0
    %v489 = vand.u32 %v20, 4294901760
    %v490 = vsub.f32 %v20, %v489
    %491 = vmatpush1.msra.mxu0 %v490
    %492 = vmatprep.subr.mxu0 0.0
    %v493 = vand.u32 %v51, 4294901760
    %v494 = vsub.f32 %v51, %v493
    %495 = vmatpush2.msra.mxu0 %v494
    %496 = vmatprep.subr.mxu0 0.0
    %v497 = vand.u32 %v50, 4294901760
    %v498 = vsub.f32 %v50, %v497
    %499 = vmatpush2.msra.mxu0 %v498
    %500 = vmatprep.subr.mxu0 0.0
    %v501 = vand.u32 %v49, 4294901760
    %v502 = vsub.f32 %v49, %v501
    %503 = vmatpush2.msra.mxu0 %v502
    %504 = vmatprep.subr.mxu0 0.0
    %v505 = vand.u32 %v48, 4294901760
    %v506 = vsub.f32 %v48, %v505
    %507 = vmatpush2.msra.mxu0 %v506
    %508 = vmatprep.subr.mxu0 0.0
    %v509 = vand.u32 %v47, 4294901760
    %v510 = vsub.f32 %v47, %v509
    %511 = vmatpush2.msra.mxu0 %v510
    %512 = vmatprep.subr.mxu0 0.0
    %v513 = vand.u32 %v46, 4294901760
    %v514 = vsub.f32 %v46, %v513
    %515 = vmatpush2.msra.mxu0 %v514
    %516 = vmatprep.subr.mxu0 0.0
    %v517 = vand.u32 %v45, 4294901760
    %v518 = vsub.f32 %v45, %v517
    %519 = vmatpush2.msra.mxu0 %v518
    %520 = vmatprep.subr.mxu0 0.0
    %v521 = vand.u32 %v44, 4294901760
    %v522 = vsub.f32 %v44, %v521
    %523 = vmatpush2.msra.mxu0 %v522
    %524 = vmatprep.subr.mxu0 0.0
    %v525 = vand.u32 %v43, 4294901760
    %v526 = vsub.f32 %v43, %v525
    %527 = vmatpush2.msra.mxu0 %v526
    %528 = vmatprep.subr.mxu0 0.0
    %v529 = vand.u32 %v42, 4294901760
    %v530 = vsub.f32 %v42, %v529
    %531 = vmatpush2.msra.mxu0 %v530
    %532 = vmatprep.subr.mxu0 0.0
    %v533 = vand.u32 %v41, 4294901760
    %v534 = vsub.f32 %v41, %v533
    %535 = vmatpush2.msra.mxu0 %v534
    %536 = vmatprep.subr.mxu0 0.0
    %v537 = vand.u32 %v40, 4294901760
    %v538 = vsub.f32 %v40, %v537
    %539 = vmatpush2.msra.mxu0 %v538
    %540 = vmatprep.subr.mxu0 0.0
    %v541 = vand.u32 %v39, 4294901760
    %v542 = vsub.f32 %v39, %v541
    %543 = vmatpush2.msra.mxu0 %v542
    %544 = vmatprep.subr.mxu0 0.0
    %v545 = vand.u32 %v38, 4294901760
    %v546 = vsub.f32 %v38, %v545
    %547 = vmatpush2.msra.mxu0 %v546
    %548 = vmatprep.subr.mxu0 0.0
    %v549 = vand.u32 %v37, 4294901760
    %v550 = vsub.f32 %v37, %v549
    %551 = vmatpush2.msra.mxu0 %v550
    %552 = vmatprep.subr.mxu0 0.0
    %v553 = vand.u32 %v36, 4294901760
    %v554 = vsub.f32 %v36, %v553
    %555 = vmatpush2.msra.mxu0 %v554
    %v556 = vand.u32 %v17, 4294901760
    %v557 = vsub.f32 %v17, %v556
    %558 = vmatprep.mubr.f32.mxu0 %v557
    %v559 = vand.u32 %v16, 4294901760
    %v560 = vsub.f32 %v16, %v559
    %561 = vmatmul.mubr.f32.gmra.mxu0 %v560
    %v562 = vpop.f32.mrf.mxu0
    %v563 = vadd.f32 %v425, %v562
    %v564 = vpop.f32.mrf.mxu0
    %565 = vdwg.mxu0
    %566 = vmatprep.subr.mxu0 0.0
    %v567 = vand.u32 %v35, 4294901760
    %568 = vmatpush1.msra.mxu0 %v567
    %569 = vmatprep.subr.mxu0 0.0
    %v570 = vand.u32 %v34, 4294901760
    %571 = vmatpush1.msra.mxu0 %v570
    %572 = vmatprep.subr.mxu0 0.0
    %v573 = vand.u32 %v33, 4294901760
    %574 = vmatpush1.msra.mxu0 %v573
    %575 = vmatprep.subr.mxu0 0.0
    %v576 = vand.u32 %v32, 4294901760
    %577 = vmatpush1.msra.mxu0 %v576
    %578 = vmatprep.subr.mxu0 0.0
    %v579 = vand.u32 %v31, 4294901760
    %580 = vmatpush1.msra.mxu0 %v579
    %581 = vmatprep.subr.mxu0 0.0
    %v582 = vand.u32 %v30, 4294901760
    %583 = vmatpush1.msra.mxu0 %v582
    %584 = vmatprep.subr.mxu0 0.0
    %v585 = vand.u32 %v29, 4294901760
    %586 = vmatpush1.msra.mxu0 %v585
    %587 = vmatprep.subr.mxu0 0.0
    %v588 = vand.u32 %v28, 4294901760
    %589 = vmatpush1.msra.mxu0 %v588
    %590 = vmatprep.subr.mxu0 0.0
    %v591 = vand.u32 %v27, 4294901760
    %592 = vmatpush1.msra.mxu0 %v591
    %593 = vmatprep.subr.mxu0 0.0
    %v594 = vand.u32 %v26, 4294901760
    %595 = vmatpush1.msra.mxu0 %v594
    %596 = vmatprep.subr.mxu0 0.0
    %v597 = vand.u32 %v25, 4294901760
    %598 = vmatpush1.msra.mxu0 %v597
    %599 = vmatprep.subr.mxu0 0.0
    %v600 = vand.u32 %v24, 4294901760
    %601 = vmatpush1.msra.mxu0 %v600
    %602 = vmatprep.subr.mxu0 0.0
    %v603 = vand.u32 %v23, 4294901760
    %604 = vmatpush1.msra.mxu0 %v603
    %605 = vmatprep.subr.mxu0 0.0
    %v606 = vand.u32 %v22, 4294901760
    %607 = vmatpush1.msra.mxu0 %v606
    %608 = vmatprep.subr.mxu0 0.0
    %v609 = vand.u32 %v21, 4294901760
    %610 = vmatpush1.msra.mxu0 %v609
    %611 = vmatprep.subr.mxu0 0.0
    %v612 = vand.u32 %v20, 4294901760
    %613 = vmatpush1.msra.mxu0 %v612
    %614 = vmatprep.subr.mxu0 0.0
    %v615 = vand.u32 %v51, 4294901760
    %616 = vmatpush2.msra.mxu0 %v615
    %617 = vmatprep.subr.mxu0 0.0
    %v618 = vand.u32 %v50, 4294901760
    %619 = vmatpush2.msra.mxu0 %v618
    %620 = vmatprep.subr.mxu0 0.0
    %v621 = vand.u32 %v49, 4294901760
    %622 = vmatpush2.msra.mxu0 %v621
    %623 = vmatprep.subr.mxu0 0.0
    %v624 = vand.u32 %v48, 4294901760
    %625 = vmatpush2.msra.mxu0 %v624
    %626 = vmatprep.subr.mxu0 0.0
    %v627 = vand.u32 %v47, 4294901760
    %628 = vmatpush2.msra.mxu0 %v627
    %629 = vmatprep.subr.mxu0 0.0
    %v630 = vand.u32 %v46, 4294901760
    %631 = vmatpush2.msra.mxu0 %v630
    %632 = vmatprep.subr.mxu0 0.0
    %v633 = vand.u32 %v45, 4294901760
    %634 = vmatpush2.msra.mxu0 %v633
    %635 = vmatprep.subr.mxu0 0.0
    %v636 = vand.u32 %v44, 4294901760
    %637 = vmatpush2.msra.mxu0 %v636
    %638 = vmatprep.subr.mxu0 0.0
    %v639 = vand.u32 %v43, 4294901760
    %640 = vmatpush2.msra.mxu0 %v639
    %641 = vmatprep.subr.mxu0 0.0
    %v642 = vand.u32 %v42, 4294901760
    %643 = vmatpush2.msra.mxu0 %v642
    %644 = vmatprep.subr.mxu0 0.0
    %v645 = vand.u32 %v41, 4294901760
    %646 = vmatpush2.msra.mxu0 %v645
    %647 = vmatprep.subr.mxu0 0.0
    %v648 = vand.u32 %v40, 4294901760
    %649 = vmatpush2.msra.mxu0 %v648
    %650 = vmatprep.subr.mxu0 0.0
    %v651 = vand.u32 %v39, 4294901760
    %652 = vmatpush2.msra.mxu0 %v651
    %653 = vmatprep.subr.mxu0 0.0
    %v654 = vand.u32 %v38, 4294901760
    %655 = vmatpush2.msra.mxu0 %v654
    %656 = vmatprep.subr.mxu0 0.0
    %v657 = vand.u32 %v37, 4294901760
    %658 = vmatpush2.msra.mxu0 %v657
    %659 = vmatprep.subr.mxu0 0.0
    %v660 = vand.u32 %v36, 4294901760
    %661 = vmatpush2.msra.mxu0 %v660
    %v662 = vand.u32 %v17, 4294901760
    %v663 = vsub.f32 %v17, %v662
    %v664 = vand.u32 %v663, 4294901760
    %665 = vmatprep.mubr.f32.mxu0 %v664
    %v666 = vand.u32 %v16, 4294901760
    %v667 = vsub.f32 %v16, %v666
    %v668 = vand.u32 %v667, 4294901760
    %669 = vmatmul.mubr.f32.gmra.mxu0 %v668
    %v670 = vpop.f32.mrf.mxu0
    %v671 = vadd.f32 %v563, %v670
    %v672 = vpop.f32.mrf.mxu0
    %673 = vdwg.mxu0
    %674 = vmatprep.subr.mxu0 0.0
    %v675 = vand.u32 %v35, 4294901760
    %v676 = vsub.f32 %v35, %v675
    %v677 = vand.u32 %v676, 4294901760
    %678 = vmatpush1.msra.mxu0 %v677
    %679 = vmatprep.subr.mxu0 0.0
    %v680 = vand.u32 %v34, 4294901760
    %v681 = vsub.f32 %v34, %v680
    %v682 = vand.u32 %v681, 4294901760
    %683 = vmatpush1.msra.mxu0 %v682
    %684 = vmatprep.subr.mxu0 0.0
    %v685 = vand.u32 %v33, 4294901760
    %v686 = vsub.f32 %v33, %v685
    %v687 = vand.u32 %v686, 4294901760
    %688 = vmatpush1.msra.mxu0 %v687
    %689 = vmatprep.subr.mxu0 0.0
    %v690 = vand.u32 %v32, 4294901760
    %v691 = vsub.f32 %v32, %v690
    %v692 = vand.u32 %v691, 4294901760
    %693 = vmatpush1.msra.mxu0 %v692
    %694 = vmatprep.subr.mxu0 0.0
    %v695 = vand.u32 %v31, 4294901760
    %v696 = vsub.f32 %v31, %v695
    %v697 = vand.u32 %v696, 4294901760
    %698 = vmatpush1.msra.mxu0 %v697
    %699 = vmatprep.subr.mxu0 0.0
    %v700 = vand.u32 %v30, 4294901760
    %v701 = vsub.f32 %v30, %v700
    %v702 = vand.u32 %v701, 4294901760
    %703 = vmatpush1.msra.mxu0 %v702
    %704 = vmatprep.subr.mxu0 0.0
    %v705 = vand.u32 %v29, 4294901760
    %v706 = vsub.f32 %v29, %v705
    %v707 = vand.u32 %v706, 4294901760
    %708 = vmatpush1.msra.mxu0 %v707
    %709 = vmatprep.subr.mxu0 0.0
    %v710 = vand.u32 %v28, 4294901760
    %v711 = vsub.f32 %v28, %v710
    %v712 = vand.u32 %v711, 4294901760
    %713 = vmatpush1.msra.mxu0 %v712
    %714 = vmatprep.subr.mxu0 0.0
    %v715 = vand.u32 %v27, 4294901760
    %v716 = vsub.f32 %v27, %v715
    %v717 = vand.u32 %v716, 4294901760
    %718 = vmatpush1.msra.mxu0 %v717
    %719 = vmatprep.subr.mxu0 0.0
    %v720 = vand.u32 %v26, 4294901760
    %v721 = vsub.f32 %v26, %v720
    %v722 = vand.u32 %v721, 4294901760
    %723 = vmatpush1.msra.mxu0 %v722
    %724 = vmatprep.subr.mxu0 0.0
    %v725 = vand.u32 %v25, 4294901760
    %v726 = vsub.f32 %v25, %v725
    %v727 = vand.u32 %v726, 4294901760
    %728 = vmatpush1.msra.mxu0 %v727
    %729 = vmatprep.subr.mxu0 0.0
    %v730 = vand.u32 %v24, 4294901760
    %v731 = vsub.f32 %v24, %v730
    %v732 = vand.u32 %v731, 4294901760
    %733 = vmatpush1.msra.mxu0 %v732
    %734 = vmatprep.subr.mxu0 0.0
    %v735 = vand.u32 %v23, 4294901760
    %v736 = vsub.f32 %v23, %v735
    %v737 = vand.u32 %v736, 4294901760
    %738 = vmatpush1.msra.mxu0 %v737
    %739 = vmatprep.subr.mxu0 0.0
    %v740 = vand.u32 %v22, 4294901760
    %v741 = vsub.f32 %v22, %v740
    %v742 = vand.u32 %v741, 4294901760
    %743 = vmatpush1.msra.mxu0 %v742
    %744 = vmatprep.subr.mxu0 0.0
    %v745 = vand.u32 %v21, 4294901760
    %v746 = vsub.f32 %v21, %v745
    %v747 = vand.u32 %v746, 4294901760
    %748 = vmatpush1.msra.mxu0 %v747
    %749 = vmatprep.subr.mxu0 0.0
    %v750 = vand.u32 %v20, 4294901760
    %v751 = vsub.f32 %v20, %v750
    %v752 = vand.u32 %v751, 4294901760
    %753 = vmatpush1.msra.mxu0 %v752
    %754 = vmatprep.subr.mxu0 0.0
    %v755 = vand.u32 %v51, 4294901760
    %v756 = vsub.f32 %v51, %v755
    %v757 = vand.u32 %v756, 4294901760
    %758 = vmatpush2.msra.mxu0 %v757
    %759 = vmatprep.subr.mxu0 0.0
    %v760 = vand.u32 %v50, 4294901760
    %v761 = vsub.f32 %v50, %v760
    %v762 = vand.u32 %v761, 4294901760
    %763 = vmatpush2.msra.mxu0 %v762
    %764 = vmatprep.subr.mxu0 0.0
    %v765 = vand.u32 %v49, 4294901760
    %v766 = vsub.f32 %v49, %v765
    %v767 = vand.u32 %v766, 4294901760
    %768 = vmatpush2.msra.mxu0 %v767
    %769 = vmatprep.subr.mxu0 0.0
    %v770 = vand.u32 %v48, 4294901760
    %v771 = vsub.f32 %v48, %v770
    %v772 = vand.u32 %v771, 4294901760
    %773 = vmatpush2.msra.mxu0 %v772
    %774 = vmatprep.subr.mxu0 0.0
    %v775 = vand.u32 %v47, 4294901760
    %v776 = vsub.f32 %v47, %v775
    %v777 = vand.u32 %v776, 4294901760
    %778 = vmatpush2.msra.mxu0 %v777
    %779 = vmatprep.subr.mxu0 0.0
    %v780 = vand.u32 %v46, 4294901760
    %v781 = vsub.f32 %v46, %v780
    %v782 = vand.u32 %v781, 4294901760
    %783 = vmatpush2.msra.mxu0 %v782
    %784 = vmatprep.subr.mxu0 0.0
    %v785 = vand.u32 %v45, 4294901760
    %v786 = vsub.f32 %v45, %v785
    %v787 = vand.u32 %v786, 4294901760
    %788 = vmatpush2.msra.mxu0 %v787
    %789 = vmatprep.subr.mxu0 0.0
    %v790 = vand.u32 %v44, 4294901760
    %v791 = vsub.f32 %v44, %v790
    %v792 = vand.u32 %v791, 4294901760
    %793 = vmatpush2.msra.mxu0 %v792
    %794 = vmatprep.subr.mxu0 0.0
    %v795 = vand.u32 %v43, 4294901760
    %v796 = vsub.f32 %v43, %v795
    %v797 = vand.u32 %v796, 4294901760
    %798 = vmatpush2.msra.mxu0 %v797
    %799 = vmatprep.subr.mxu0 0.0
    %v800 = vand.u32 %v42, 4294901760
    %v801 = vsub.f32 %v42, %v800
    %v802 = vand.u32 %v801, 4294901760
    %803 = vmatpush2.msra.mxu0 %v802
    %804 = vmatprep.subr.mxu0 0.0
    %v805 = vand.u32 %v41, 4294901760
    %v806 = vsub.f32 %v41, %v805
    %v807 = vand.u32 %v806, 4294901760
    %808 = vmatpush2.msra.mxu0 %v807
    %809 = vmatprep.subr.mxu0 0.0
    %v810 = vand.u32 %v40, 4294901760
    %v811 = vsub.f32 %v40, %v810
    %v812 = vand.u32 %v811, 4294901760
    %813 = vmatpush2.msra.mxu0 %v812
    %814 = vmatprep.subr.mxu0 0.0
    %v815 = vand.u32 %v39, 4294901760
    %v816 = vsub.f32 %v39, %v815
    %v817 = vand.u32 %v816, 4294901760
    %818 = vmatpush2.msra.mxu0 %v817
    %819 = vmatprep.subr.mxu0 0.0
    %v820 = vand.u32 %v38, 4294901760
    %v821 = vsub.f32 %v38, %v820
    %v822 = vand.u32 %v821, 4294901760
    %823 = vmatpush2.msra.mxu0 %v822
    %824 = vmatprep.subr.mxu0 0.0
    %v825 = vand.u32 %v37, 4294901760
    %v826 = vsub.f32 %v37, %v825
    %v827 = vand.u32 %v826, 4294901760
    %828 = vmatpush2.msra.mxu0 %v827
    %829 = vmatprep.subr.mxu0 0.0
    %v830 = vand.u32 %v36, 4294901760
    %v831 = vsub.f32 %v36, %v830
    %v832 = vand.u32 %v831, 4294901760
    %833 = vmatpush2.msra.mxu0 %v832
    %v834 = vand.u32 %v17, 4294901760
    %835 = vmatprep.mubr.f32.mxu0 %v834
    %v836 = vand.u32 %v16, 4294901760
    %837 = vmatmul.mubr.f32.gmra.mxu0 %v836
    %v838 = vpop.f32.mrf.mxu0
    %v839 = vadd.f32 %v671, %v838
    %v840 = vpop.f32.mrf.mxu0
    %841 = vdwg.mxu0
    %842 = vmatprep.subr.mxu0 0.0
    %v843 = vand.u32 %v35, 4294901760
    %844 = vmatpush1.msra.mxu0 %v843
    %845 = vmatprep.subr.mxu0 0.0
    %v846 = vand.u32 %v34, 4294901760
    %847 = vmatpush1.msra.mxu0 %v846
    %848 = vmatprep.subr.mxu0 0.0
    %v849 = vand.u32 %v33, 4294901760
    %850 = vmatpush1.msra.mxu0 %v849
    %851 = vmatprep.subr.mxu0 0.0
    %v852 = vand.u32 %v32, 4294901760
    %853 = vmatpush1.msra.mxu0 %v852
    %854 = vmatprep.subr.mxu0 0.0
    %v855 = vand.u32 %v31, 4294901760
    %856 = vmatpush1.msra.mxu0 %v855
    %857 = vmatprep.subr.mxu0 0.0
    %v858 = vand.u32 %v30, 4294901760
    %859 = vmatpush1.msra.mxu0 %v858
    %860 = vmatprep.subr.mxu0 0.0
    %v861 = vand.u32 %v29, 4294901760
    %862 = vmatpush1.msra.mxu0 %v861
    %863 = vmatprep.subr.mxu0 0.0
    %v864 = vand.u32 %v28, 4294901760
    %865 = vmatpush1.msra.mxu0 %v864
    %866 = vmatprep.subr.mxu0 0.0
    %v867 = vand.u32 %v27, 4294901760
    %868 = vmatpush1.msra.mxu0 %v867
    %869 = vmatprep.subr.mxu0 0.0
    %v870 = vand.u32 %v26, 4294901760
    %871 = vmatpush1.msra.mxu0 %v870
    %872 = vmatprep.subr.mxu0 0.0
    %v873 = vand.u32 %v25, 4294901760
    %874 = vmatpush1.msra.mxu0 %v873
    %875 = vmatprep.subr.mxu0 0.0
    %v876 = vand.u32 %v24, 4294901760
    %877 = vmatpush1.msra.mxu0 %v876
    %878 = vmatprep.subr.mxu0 0.0
    %v879 = vand.u32 %v23, 4294901760
    %880 = vmatpush1.msra.mxu0 %v879
    %881 = vmatprep.subr.mxu0 0.0
    %v882 = vand.u32 %v22, 4294901760
    %883 = vmatpush1.msra.mxu0 %v882
    %884 = vmatprep.subr.mxu0 0.0
    %v885 = vand.u32 %v21, 4294901760
    %886 = vmatpush1.msra.mxu0 %v885
    %887 = vmatprep.subr.mxu0 0.0
    %v888 = vand.u32 %v20, 4294901760
    %889 = vmatpush1.msra.mxu0 %v888
    %890 = vmatprep.subr.mxu0 0.0
    %v891 = vand.u32 %v51, 4294901760
    %892 = vmatpush2.msra.mxu0 %v891
    %893 = vmatprep.subr.mxu0 0.0
    %v894 = vand.u32 %v50, 4294901760
    %895 = vmatpush2.msra.mxu0 %v894
    %896 = vmatprep.subr.mxu0 0.0
    %v897 = vand.u32 %v49, 4294901760
    %898 = vmatpush2.msra.mxu0 %v897
    %899 = vmatprep.subr.mxu0 0.0
    %v900 = vand.u32 %v48, 4294901760
    %901 = vmatpush2.msra.mxu0 %v900
    %902 = vmatprep.subr.mxu0 0.0
    %v903 = vand.u32 %v47, 4294901760
    %904 = vmatpush2.msra.mxu0 %v903
    %905 = vmatprep.subr.mxu0 0.0
    %v906 = vand.u32 %v46, 4294901760
    %907 = vmatpush2.msra.mxu0 %v906
    %908 = vmatprep.subr.mxu0 0.0
    %v909 = vand.u32 %v45, 4294901760
    %910 = vmatpush2.msra.mxu0 %v909
    %911 = vmatprep.subr.mxu0 0.0
    %v912 = vand.u32 %v44, 4294901760
    %913 = vmatpush2.msra.mxu0 %v912
    %914 = vmatprep.subr.mxu0 0.0
    %v915 = vand.u32 %v43, 4294901760
    %916 = vmatpush2.msra.mxu0 %v915
    %917 = vmatprep.subr.mxu0 0.0
    %v918 = vand.u32 %v42, 4294901760
    %919 = vmatpush2.msra.mxu0 %v918
    %920 = vmatprep.subr.mxu0 0.0
    %v921 = vand.u32 %v41, 4294901760
    %922 = vmatpush2.msra.mxu0 %v921
    %923 = vmatprep.subr.mxu0 0.0
    %v924 = vand.u32 %v40, 4294901760
    %925 = vmatpush2.msra.mxu0 %v924
    %926 = vmatprep.subr.mxu0 0.0
    %v927 = vand.u32 %v39, 4294901760
    %928 = vmatpush2.msra.mxu0 %v927
    %929 = vmatprep.subr.mxu0 0.0
    %v930 = vand.u32 %v38, 4294901760
    %931 = vmatpush2.msra.mxu0 %v930
    %932 = vmatprep.subr.mxu0 0.0
    %v933 = vand.u32 %v37, 4294901760
    %934 = vmatpush2.msra.mxu0 %v933
    %935 = vmatprep.subr.mxu0 0.0
    %v936 = vand.u32 %v36, 4294901760
    %937 = vmatpush2.msra.mxu0 %v936
    %v938 = vand.u32 %v17, 4294901760
    %939 = vmatprep.mubr.f32.mxu0 %v938
    %v940 = vand.u32 %v16, 4294901760
    %941 = vmatmul.mubr.f32.gmra.mxu0 %v940
    %v942 = vpop.f32.mrf.mxu0
    %v943 = vadd.f32 %v839, %v942
    %v944 = vpop.f32.mrf.mxu0
    %945 = vdwg.mxu0
    %946 = vmatprep.subr.mxu0 0.0
    %v947 = vand.u32 %v67, 4294901760
    %948 = vmatpush1.msra.mxu0 %v947
    %949 = vmatprep.subr.mxu0 0.0
    %v950 = vand.u32 %v66, 4294901760
    %951 = vmatpush1.msra.mxu0 %v950
    %952 = vmatprep.subr.mxu0 0.0
    %v953 = vand.u32 %v65, 4294901760
    %954 = vmatpush1.msra.mxu0 %v953
    %955 = vmatprep.subr.mxu0 0.0
    %v956 = vand.u32 %v64, 4294901760
    %957 = vmatpush1.msra.mxu0 %v956
    %958 = vmatprep.subr.mxu0 0.0
    %v959 = vand.u32 %v63, 4294901760
    %960 = vmatpush1.msra.mxu0 %v959
    %961 = vmatprep.subr.mxu0 0.0
    %v962 = vand.u32 %v62, 4294901760
    %963 = vmatpush1.msra.mxu0 %v962
    %964 = vmatprep.subr.mxu0 0.0
    %v965 = vand.u32 %v61, 4294901760
    %966 = vmatpush1.msra.mxu0 %v965
    %967 = vmatprep.subr.mxu0 0.0
    %v968 = vand.u32 %v60, 4294901760
    %969 = vmatpush1.msra.mxu0 %v968
    %970 = vmatprep.subr.mxu0 0.0
    %v971 = vand.u32 %v59, 4294901760
    %972 = vmatpush1.msra.mxu0 %v971
    %973 = vmatprep.subr.mxu0 0.0
    %v974 = vand.u32 %v58, 4294901760
    %975 = vmatpush1.msra.mxu0 %v974
    %976 = vmatprep.subr.mxu0 0.0
    %v977 = vand.u32 %v57, 4294901760
    %978 = vmatpush1.msra.mxu0 %v977
    %979 = vmatprep.subr.mxu0 0.0
    %v980 = vand.u32 %v56, 4294901760
    %981 = vmatpush1.msra.mxu0 %v980
    %982 = vmatprep.subr.mxu0 0.0
    %v983 = vand.u32 %v55, 4294901760
    %984 = vmatpush1.msra.mxu0 %v983
    %985 = vmatprep.subr.mxu0 0.0
    %v986 = vand.u32 %v54, 4294901760
    %987 = vmatpush1.msra.mxu0 %v986
    %988 = vmatprep.subr.mxu0 0.0
    %v989 = vand.u32 %v53, 4294901760
    %990 = vmatpush1.msra.mxu0 %v989
    %991 = vmatprep.subr.mxu0 0.0
    %v992 = vand.u32 %v52, 4294901760
    %993 = vmatpush1.msra.mxu0 %v992
    %994 = vmatprep.subr.mxu0 0.0
    %v995 = vand.u32 %v83, 4294901760
    %996 = vmatpush2.msra.mxu0 %v995
    %997 = vmatprep.subr.mxu0 0.0
    %v998 = vand.u32 %v82, 4294901760
    %999 = vmatpush2.msra.mxu0 %v998
    %1000 = vmatprep.subr.mxu0 0.0
    %v1001 = vand.u32 %v81, 4294901760
    %1002 = vmatpush2.msra.mxu0 %v1001
    %1003 = vmatprep.subr.mxu0 0.0
    %v1004 = vand.u32 %v80, 4294901760
    %1005 = vmatpush2.msra.mxu0 %v1004
    %1006 = vmatprep.subr.mxu0 0.0
    %v1007 = vand.u32 %v79, 4294901760
    %1008 = vmatpush2.msra.mxu0 %v1007
    %1009 = vmatprep.subr.mxu0 0.0
    %v1010 = vand.u32 %v78, 4294901760
    %1011 = vmatpush2.msra.mxu0 %v1010
    %1012 = vmatprep.subr.mxu0 0.0
    %v1013 = vand.u32 %v77, 4294901760
    %1014 = vmatpush2.msra.mxu0 %v1013
    %1015 = vmatprep.subr.mxu0 0.0
    %v1016 = vand.u32 %v76, 4294901760
    %1017 = vmatpush2.msra.mxu0 %v1016
    %1018 = vmatprep.subr.mxu0 0.0
    %v1019 = vand.u32 %v75, 4294901760
    %1020 = vmatpush2.msra.mxu0 %v1019
    %1021 = vmatprep.subr.mxu0 0.0
    %v1022 = vand.u32 %v74, 4294901760
    %1023 = vmatpush2.msra.mxu0 %v1022
    %1024 = vmatprep.subr.mxu0 0.0
    %v1025 = vand.u32 %v73, 4294901760
    %1026 = vmatpush2.msra.mxu0 %v1025
    %1027 = vmatprep.subr.mxu0 0.0
    %v1028 = vand.u32 %v72, 4294901760
    %1029 = vmatpush2.msra.mxu0 %v1028
    %1030 = vmatprep.subr.mxu0 0.0
    %v1031 = vand.u32 %v71, 4294901760
    %1032 = vmatpush2.msra.mxu0 %v1031
    %1033 = vmatprep.subr.mxu0 0.0
    %v1034 = vand.u32 %v70, 4294901760
    %1035 = vmatpush2.msra.mxu0 %v1034
    %1036 = vmatprep.subr.mxu0 0.0
    %v1037 = vand.u32 %v69, 4294901760
    %1038 = vmatpush2.msra.mxu0 %v1037
    %1039 = vmatprep.subr.mxu0 0.0
    %v1040 = vand.u32 %v68, 4294901760
    %1041 = vmatpush2.msra.mxu0 %v1040
    %v1042 = vand.u32 %v19, 4294901760
    %v1043 = vsub.f32 %v19, %v1042
    %v1044 = vand.u32 %v1043, 4294901760
    %v1045 = vsub.f32 %v1043, %v1044
    %v1046 = vand.u32 %v1045, 4294901760
    %1047 = vmatprep.mubr.f32.mxu0 %v1046
    %v1048 = vand.u32 %v18, 4294901760
    %v1049 = vsub.f32 %v18, %v1048
    %v1050 = vand.u32 %v1049, 4294901760
    %v1051 = vsub.f32 %v1049, %v1050
    %v1052 = vand.u32 %v1051, 4294901760
    %1053 = vmatmul.mubr.f32.gmra.mxu0 %v1052
    %v1054 = vpop.f32.mrf.mxu0
    %v1055 = vadd.f32 %v943, %v1054
    %v1056 = vpop.f32.mrf.mxu0
    %1057 = vdwg.mxu0
    %1058 = vmatprep.subr.mxu0 0.0
    %v1059 = vand.u32 %v67, 4294901760
    %v1060 = vsub.f32 %v67, %v1059
    %v1061 = vand.u32 %v1060, 4294901760
    %v1062 = vsub.f32 %v1060, %v1061
    %v1063 = vand.u32 %v1062, 4294901760
    %1064 = vmatpush1.msra.mxu0 %v1063
    %1065 = vmatprep.subr.mxu0 0.0
    %v1066 = vand.u32 %v66, 4294901760
    %v1067 = vsub.f32 %v66, %v1066
    %v1068 = vand.u32 %v1067, 4294901760
    %v1069 = vsub.f32 %v1067, %v1068
    %v1070 = vand.u32 %v1069, 4294901760
    %1071 = vmatpush1.msra.mxu0 %v1070
    %1072 = vmatprep.subr.mxu0 0.0
    %v1073 = vand.u32 %v65, 4294901760
    %v1074 = vsub.f32 %v65, %v1073
    %v1075 = vand.u32 %v1074, 4294901760
    %v1076 = vsub.f32 %v1074, %v1075
    %v1077 = vand.u32 %v1076, 4294901760
    %1078 = vmatpush1.msra.mxu0 %v1077
    %1079 = vmatprep.subr.mxu0 0.0
    %v1080 = vand.u32 %v64, 4294901760
    %v1081 = vsub.f32 %v64, %v1080
    %v1082 = vand.u32 %v1081, 4294901760
    %v1083 = vsub.f32 %v1081, %v1082
    %v1084 = vand.u32 %v1083, 4294901760
    %1085 = vmatpush1.msra.mxu0 %v1084
    %1086 = vmatprep.subr.mxu0 0.0
    %v1087 = vand.u32 %v63, 4294901760
    %v1088 = vsub.f32 %v63, %v1087
    %v1089 = vand.u32 %v1088, 4294901760
    %v1090 = vsub.f32 %v1088, %v1089
    %v1091 = vand.u32 %v1090, 4294901760
    %1092 = vmatpush1.msra.mxu0 %v1091
    %1093 = vmatprep.subr.mxu0 0.0
    %v1094 = vand.u32 %v62, 4294901760
    %v1095 = vsub.f32 %v62, %v1094
    %v1096 = vand.u32 %v1095, 4294901760
    %v1097 = vsub.f32 %v1095, %v1096
    %v1098 = vand.u32 %v1097, 4294901760
    %1099 = vmatpush1.msra.mxu0 %v1098
    %1100 = vmatprep.subr.mxu0 0.0
    %v1101 = vand.u32 %v61, 4294901760
    %v1102 = vsub.f32 %v61, %v1101
    %v1103 = vand.u32 %v1102, 4294901760
    %v1104 = vsub.f32 %v1102, %v1103
    %v1105 = vand.u32 %v1104, 4294901760
    %1106 = vmatpush1.msra.mxu0 %v1105
    %1107 = vmatprep.subr.mxu0 0.0
    %v1108 = vand.u32 %v60, 4294901760
    %v1109 = vsub.f32 %v60, %v1108
    %v1110 = vand.u32 %v1109, 4294901760
    %v1111 = vsub.f32 %v1109, %v1110
    %v1112 = vand.u32 %v1111, 4294901760
    %1113 = vmatpush1.msra.mxu0 %v1112
    %1114 = vmatprep.subr.mxu0 0.0
    %v1115 = vand.u32 %v59, 4294901760
    %v1116 = vsub.f32 %v59, %v1115
    %v1117 = vand.u32 %v1116, 4294901760
    %v1118 = vsub.f32 %v1116, %v1117
    %v1119 = vand.u32 %v1118, 4294901760
    %1120 = vmatpush1.msra.mxu0 %v1119
    %1121 = vmatprep.subr.mxu0 0.0
    %v1122 = vand.u32 %v58, 4294901760
    %v1123 = vsub.f32 %v58, %v1122
    %v1124 = vand.u32 %v1123, 4294901760
    %v1125 = vsub.f32 %v1123, %v1124
    %v1126 = vand.u32 %v1125, 4294901760
    %1127 = vmatpush1.msra.mxu0 %v1126
    %1128 = vmatprep.subr.mxu0 0.0
    %v1129 = vand.u32 %v57, 4294901760
    %v1130 = vsub.f32 %v57, %v1129
    %v1131 = vand.u32 %v1130, 4294901760
    %v1132 = vsub.f32 %v1130, %v1131
    %v1133 = vand.u32 %v1132, 4294901760
    %1134 = vmatpush1.msra.mxu0 %v1133
    %1135 = vmatprep.subr.mxu0 0.0
    %v1136 = vand.u32 %v56, 4294901760
    %v1137 = vsub.f32 %v56, %v1136
    %v1138 = vand.u32 %v1137, 4294901760
    %v1139 = vsub.f32 %v1137, %v1138
    %v1140 = vand.u32 %v1139, 4294901760
    %1141 = vmatpush1.msra.mxu0 %v1140
    %1142 = vmatprep.subr.mxu0 0.0
    %v1143 = vand.u32 %v55, 4294901760
    %v1144 = vsub.f32 %v55, %v1143
    %v1145 = vand.u32 %v1144, 4294901760
    %v1146 = vsub.f32 %v1144, %v1145
    %v1147 = vand.u32 %v1146, 4294901760
    %1148 = vmatpush1.msra.mxu0 %v1147
    %1149 = vmatprep.subr.mxu0 0.0
    %v1150 = vand.u32 %v54, 4294901760
    %v1151 = vsub.f32 %v54, %v1150
    %v1152 = vand.u32 %v1151, 4294901760
    %v1153 = vsub.f32 %v1151, %v1152
    %v1154 = vand.u32 %v1153, 4294901760
    %1155 = vmatpush1.msra.mxu0 %v1154
    %1156 = vmatprep.subr.mxu0 0.0
    %v1157 = vand.u32 %v53, 4294901760
    %v1158 = vsub.f32 %v53, %v1157
    %v1159 = vand.u32 %v1158, 4294901760
    %v1160 = vsub.f32 %v1158, %v1159
    %v1161 = vand.u32 %v1160, 4294901760
    %1162 = vmatpush1.msra.mxu0 %v1161
    %1163 = vmatprep.subr.mxu0 0.0
    %v1164 = vand.u32 %v52, 4294901760
    %v1165 = vsub.f32 %v52, %v1164
    %v1166 = vand.u32 %v1165, 4294901760
    %v1167 = vsub.f32 %v1165, %v1166
    %v1168 = vand.u32 %v1167, 4294901760
    %1169 = vmatpush1.msra.mxu0 %v1168
    %1170 = vmatprep.subr.mxu0 0.0
    %v1171 = vand.u32 %v83, 4294901760
    %v1172 = vsub.f32 %v83, %v1171
    %v1173 = vand.u32 %v1172, 4294901760
    %v1174 = vsub.f32 %v1172, %v1173
    %v1175 = vand.u32 %v1174, 4294901760
    %1176 = vmatpush2.msra.mxu0 %v1175
    %1177 = vmatprep.subr.mxu0 0.0
    %v1178 = vand.u32 %v82, 4294901760
    %v1179 = vsub.f32 %v82, %v1178
    %v1180 = vand.u32 %v1179, 4294901760
    %v1181 = vsub.f32 %v1179, %v1180
    %v1182 = vand.u32 %v1181, 4294901760
    %1183 = vmatpush2.msra.mxu0 %v1182
    %1184 = vmatprep.subr.mxu0 0.0
    %v1185 = vand.u32 %v81, 4294901760
    %v1186 = vsub.f32 %v81, %v1185
    %v1187 = vand.u32 %v1186, 4294901760
    %v1188 = vsub.f32 %v1186, %v1187
    %v1189 = vand.u32 %v1188, 4294901760
    %1190 = vmatpush2.msra.mxu0 %v1189
    %1191 = vmatprep.subr.mxu0 0.0
    %v1192 = vand.u32 %v80, 4294901760
    %v1193 = vsub.f32 %v80, %v1192
    %v1194 = vand.u32 %v1193, 4294901760
    %v1195 = vsub.f32 %v1193, %v1194
    %v1196 = vand.u32 %v1195, 4294901760
    %1197 = vmatpush2.msra.mxu0 %v1196
    %1198 = vmatprep.subr.mxu0 0.0
    %v1199 = vand.u32 %v79, 4294901760
    %v1200 = vsub.f32 %v79, %v1199
    %v1201 = vand.u32 %v1200, 4294901760
    %v1202 = vsub.f32 %v1200, %v1201
    %v1203 = vand.u32 %v1202, 4294901760
    %1204 = vmatpush2.msra.mxu0 %v1203
    %1205 = vmatprep.subr.mxu0 0.0
    %v1206 = vand.u32 %v78, 4294901760
    %v1207 = vsub.f32 %v78, %v1206
    %v1208 = vand.u32 %v1207, 4294901760
    %v1209 = vsub.f32 %v1207, %v1208
    %v1210 = vand.u32 %v1209, 4294901760
    %1211 = vmatpush2.msra.mxu0 %v1210
    %1212 = vmatprep.subr.mxu0 0.0
    %v1213 = vand.u32 %v77, 4294901760
    %v1214 = vsub.f32 %v77, %v1213
    %v1215 = vand.u32 %v1214, 4294901760
    %v1216 = vsub.f32 %v1214, %v1215
    %v1217 = vand.u32 %v1216, 4294901760
    %1218 = vmatpush2.msra.mxu0 %v1217
    %1219 = vmatprep.subr.mxu0 0.0
    %v1220 = vand.u32 %v76, 4294901760
    %v1221 = vsub.f32 %v76, %v1220
    %v1222 = vand.u32 %v1221, 4294901760
    %v1223 = vsub.f32 %v1221, %v1222
    %v1224 = vand.u32 %v1223, 4294901760
    %1225 = vmatpush2.msra.mxu0 %v1224
    %1226 = vmatprep.subr.mxu0 0.0
    %v1227 = vand.u32 %v75, 4294901760
    %v1228 = vsub.f32 %v75, %v1227
    %v1229 = vand.u32 %v1228, 4294901760
    %v1230 = vsub.f32 %v1228, %v1229
    %v1231 = vand.u32 %v1230, 4294901760
    %1232 = vmatpush2.msra.mxu0 %v1231
    %1233 = vmatprep.subr.mxu0 0.0
    %v1234 = vand.u32 %v74, 4294901760
    %v1235 = vsub.f32 %v74, %v1234
    %v1236 = vand.u32 %v1235, 4294901760
    %v1237 = vsub.f32 %v1235, %v1236
    %v1238 = vand.u32 %v1237, 4294901760
    %1239 = vmatpush2.msra.mxu0 %v1238
    %1240 = vmatprep.subr.mxu0 0.0
    %v1241 = vand.u32 %v73, 4294901760
    %v1242 = vsub.f32 %v73, %v1241
    %v1243 = vand.u32 %v1242, 4294901760
    %v1244 = vsub.f32 %v1242, %v1243
    %v1245 = vand.u32 %v1244, 4294901760
    %1246 = vmatpush2.msra.mxu0 %v1245
    %1247 = vmatprep.subr.mxu0 0.0
    %v1248 = vand.u32 %v72, 4294901760
    %v1249 = vsub.f32 %v72, %v1248
    %v1250 = vand.u32 %v1249, 4294901760
    %v1251 = vsub.f32 %v1249, %v1250
    %v1252 = vand.u32 %v1251, 4294901760
    %1253 = vmatpush2.msra.mxu0 %v1252
    %1254 = vmatprep.subr.mxu0 0.0
    %v1255 = vand.u32 %v71, 4294901760
    %v1256 = vsub.f32 %v71, %v1255
    %v1257 = vand.u32 %v1256, 4294901760
    %v1258 = vsub.f32 %v1256, %v1257
    %v1259 = vand.u32 %v1258, 4294901760
    %1260 = vmatpush2.msra.mxu0 %v1259
    %1261 = vmatprep.subr.mxu0 0.0
    %v1262 = vand.u32 %v70, 4294901760
    %v1263 = vsub.f32 %v70, %v1262
    %v1264 = vand.u32 %v1263, 4294901760
    %v1265 = vsub.f32 %v1263, %v1264
    %v1266 = vand.u32 %v1265, 4294901760
    %1267 = vmatpush2.msra.mxu0 %v1266
    %1268 = vmatprep.subr.mxu0 0.0
    %v1269 = vand.u32 %v69, 4294901760
    %v1270 = vsub.f32 %v69, %v1269
    %v1271 = vand.u32 %v1270, 4294901760
    %v1272 = vsub.f32 %v1270, %v1271
    %v1273 = vand.u32 %v1272, 4294901760
    %1274 = vmatpush2.msra.mxu0 %v1273
    %1275 = vmatprep.subr.mxu0 0.0
    %v1276 = vand.u32 %v68, 4294901760
    %v1277 = vsub.f32 %v68, %v1276
    %v1278 = vand.u32 %v1277, 4294901760
    %v1279 = vsub.f32 %v1277, %v1278
    %v1280 = vand.u32 %v1279, 4294901760
    %1281 = vmatpush2.msra.mxu0 %v1280
    %v1282 = vand.u32 %v19, 4294901760
    %1283 = vmatprep.mubr.f32.mxu0 %v1282
    %v1284 = vand.u32 %v18, 4294901760
    %1285 = vmatmul.mubr.f32.gmra.mxu0 %v1284
    %v1286 = vpop.f32.mrf.mxu0
    %v1287 = vadd.f32 %v1055, %v1286
    %v1288 = vpop.f32.mrf.mxu0
    %1289 = vdwg.mxu0
    %1290 = vmatprep.subr.mxu0 0.0
    %v1291 = vand.u32 %v67, 4294901760
    %v1292 = vsub.f32 %v67, %v1291
    %1293 = vmatpush1.msra.mxu0 %v1292
    %1294 = vmatprep.subr.mxu0 0.0
    %v1295 = vand.u32 %v66, 4294901760
    %v1296 = vsub.f32 %v66, %v1295
    %1297 = vmatpush1.msra.mxu0 %v1296
    %1298 = vmatprep.subr.mxu0 0.0
    %v1299 = vand.u32 %v65, 4294901760
    %v1300 = vsub.f32 %v65, %v1299
    %1301 = vmatpush1.msra.mxu0 %v1300
    %1302 = vmatprep.subr.mxu0 0.0
    %v1303 = vand.u32 %v64, 4294901760
    %v1304 = vsub.f32 %v64, %v1303
    %1305 = vmatpush1.msra.mxu0 %v1304
    %1306 = vmatprep.subr.mxu0 0.0
    %v1307 = vand.u32 %v63, 4294901760
    %v1308 = vsub.f32 %v63, %v1307
    %1309 = vmatpush1.msra.mxu0 %v1308
    %1310 = vmatprep.subr.mxu0 0.0
    %v1311 = vand.u32 %v62, 4294901760
    %v1312 = vsub.f32 %v62, %v1311
    %1313 = vmatpush1.msra.mxu0 %v1312
    %1314 = vmatprep.subr.mxu0 0.0
    %v1315 = vand.u32 %v61, 4294901760
    %v1316 = vsub.f32 %v61, %v1315
    %1317 = vmatpush1.msra.mxu0 %v1316
    %1318 = vmatprep.subr.mxu0 0.0
    %v1319 = vand.u32 %v60, 4294901760
    %v1320 = vsub.f32 %v60, %v1319
    %1321 = vmatpush1.msra.mxu0 %v1320
    %1322 = vmatprep.subr.mxu0 0.0
    %v1323 = vand.u32 %v59, 4294901760
    %v1324 = vsub.f32 %v59, %v1323
    %1325 = vmatpush1.msra.mxu0 %v1324
    %1326 = vmatprep.subr.mxu0 0.0
    %v1327 = vand.u32 %v58, 4294901760
    %v1328 = vsub.f32 %v58, %v1327
    %1329 = vmatpush1.msra.mxu0 %v1328
    %1330 = vmatprep.subr.mxu0 0.0
    %v1331 = vand.u32 %v57, 4294901760
    %v1332 = vsub.f32 %v57, %v1331
    %1333 = vmatpush1.msra.mxu0 %v1332
    %1334 = vmatprep.subr.mxu0 0.0
    %v1335 = vand.u32 %v56, 4294901760
    %v1336 = vsub.f32 %v56, %v1335
    %1337 = vmatpush1.msra.mxu0 %v1336
    %1338 = vmatprep.subr.mxu0 0.0
    %v1339 = vand.u32 %v55, 4294901760
    %v1340 = vsub.f32 %v55, %v1339
    %1341 = vmatpush1.msra.mxu0 %v1340
    %1342 = vmatprep.subr.mxu0 0.0
    %v1343 = vand.u32 %v54, 4294901760
    %v1344 = vsub.f32 %v54, %v1343
    %1345 = vmatpush1.msra.mxu0 %v1344
    %1346 = vmatprep.subr.mxu0 0.0
    %v1347 = vand.u32 %v53, 4294901760
    %v1348 = vsub.f32 %v53, %v1347
    %1349 = vmatpush1.msra.mxu0 %v1348
    %1350 = vmatprep.subr.mxu0 0.0
    %v1351 = vand.u32 %v52, 4294901760
    %v1352 = vsub.f32 %v52, %v1351
    %1353 = vmatpush1.msra.mxu0 %v1352
    %1354 = vmatprep.subr.mxu0 0.0
    %v1355 = vand.u32 %v83, 4294901760
    %v1356 = vsub.f32 %v83, %v1355
    %1357 = vmatpush2.msra.mxu0 %v1356
    %1358 = vmatprep.subr.mxu0 0.0
    %v1359 = vand.u32 %v82, 4294901760
    %v1360 = vsub.f32 %v82, %v1359
    %1361 = vmatpush2.msra.mxu0 %v1360
    %1362 = vmatprep.subr.mxu0 0.0
    %v1363 = vand.u32 %v81, 4294901760
    %v1364 = vsub.f32 %v81, %v1363
    %1365 = vmatpush2.msra.mxu0 %v1364
    %1366 = vmatprep.subr.mxu0 0.0
    %v1367 = vand.u32 %v80, 4294901760
    %v1368 = vsub.f32 %v80, %v1367
    %1369 = vmatpush2.msra.mxu0 %v1368
    %1370 = vmatprep.subr.mxu0 0.0
    %v1371 = vand.u32 %v79, 4294901760
    %v1372 = vsub.f32 %v79, %v1371
    %1373 = vmatpush2.msra.mxu0 %v1372
    %1374 = vmatprep.subr.mxu0 0.0
    %v1375 = vand.u32 %v78, 4294901760
    %v1376 = vsub.f32 %v78, %v1375
    %1377 = vmatpush2.msra.mxu0 %v1376
    %1378 = vmatprep.subr.mxu0 0.0
    %v1379 = vand.u32 %v77, 4294901760
    %v1380 = vsub.f32 %v77, %v1379
    %1381 = vmatpush2.msra.mxu0 %v1380
    %1382 = vmatprep.subr.mxu0 0.0
    %v1383 = vand.u32 %v76, 4294901760
    %v1384 = vsub.f32 %v76, %v1383
    %1385 = vmatpush2.msra.mxu0 %v1384
    %1386 = vmatprep.subr.mxu0 0.0
    %v1387 = vand.u32 %v75, 4294901760
    %v1388 = vsub.f32 %v75, %v1387
    %1389 = vmatpush2.msra.mxu0 %v1388
    %1390 = vmatprep.subr.mxu0 0.0
    %v1391 = vand.u32 %v74, 4294901760
    %v1392 = vsub.f32 %v74, %v1391
    %1393 = vmatpush2.msra.mxu0 %v1392
    %1394 = vmatprep.subr.mxu0 0.0
    %v1395 = vand.u32 %v73, 4294901760
    %v1396 = vsub.f32 %v73, %v1395
    %1397 = vmatpush2.msra.mxu0 %v1396
    %1398 = vmatprep.subr.mxu0 0.0
    %v1399 = vand.u32 %v72, 4294901760
    %v1400 = vsub.f32 %v72, %v1399
    %1401 = vmatpush2.msra.mxu0 %v1400
    %1402 = vmatprep.subr.mxu0 0.0
    %v1403 = vand.u32 %v71, 4294901760
    %v1404 = vsub.f32 %v71, %v1403
    %1405 = vmatpush2.msra.mxu0 %v1404
    %1406 = vmatprep.subr.mxu0 0.0
    %v1407 = vand.u32 %v70, 4294901760
    %v1408 = vsub.f32 %v70, %v1407
    %1409 = vmatpush2.msra.mxu0 %v1408
    %1410 = vmatprep.subr.mxu0 0.0
    %v1411 = vand.u32 %v69, 4294901760
    %v1412 = vsub.f32 %v69, %v1411
    %1413 = vmatpush2.msra.mxu0 %v1412
    %1414 = vmatprep.subr.mxu0 0.0
    %v1415 = vand.u32 %v68, 4294901760
    %v1416 = vsub.f32 %v68, %v1415
    %1417 = vmatpush2.msra.mxu0 %v1416
    %v1418 = vand.u32 %v19, 4294901760
    %v1419 = vsub.f32 %v19, %v1418
    %1420 = vmatprep.mubr.f32.mxu0 %v1419
    %v1421 = vand.u32 %v18, 4294901760
    %v1422 = vsub.f32 %v18, %v1421
    %1423 = vmatmul.mubr.f32.gmra.mxu0 %v1422
    %v1424 = vpop.f32.mrf.mxu0
    %v1425 = vadd.f32 %v1287, %v1424
    %v1426 = vpop.f32.mrf.mxu0
    %1427 = vdwg.mxu0
    %1428 = vmatprep.subr.mxu0 0.0
    %v1429 = vand.u32 %v67, 4294901760
    %1430 = vmatpush1.msra.mxu0 %v1429
    %1431 = vmatprep.subr.mxu0 0.0
    %v1432 = vand.u32 %v66, 4294901760
    %1433 = vmatpush1.msra.mxu0 %v1432
    %1434 = vmatprep.subr.mxu0 0.0
    %v1435 = vand.u32 %v65, 4294901760
    %1436 = vmatpush1.msra.mxu0 %v1435
    %1437 = vmatprep.subr.mxu0 0.0
    %v1438 = vand.u32 %v64, 4294901760
    %1439 = vmatpush1.msra.mxu0 %v1438
    %1440 = vmatprep.subr.mxu0 0.0
    %v1441 = vand.u32 %v63, 4294901760
    %1442 = vmatpush1.msra.mxu0 %v1441
    %1443 = vmatprep.subr.mxu0 0.0
    %v1444 = vand.u32 %v62, 4294901760
    %1445 = vmatpush1.msra.mxu0 %v1444
    %1446 = vmatprep.subr.mxu0 0.0
    %v1447 = vand.u32 %v61, 4294901760
    %1448 = vmatpush1.msra.mxu0 %v1447
    %1449 = vmatprep.subr.mxu0 0.0
    %v1450 = vand.u32 %v60, 4294901760
    %1451 = vmatpush1.msra.mxu0 %v1450
    %1452 = vmatprep.subr.mxu0 0.0
    %v1453 = vand.u32 %v59, 4294901760
    %1454 = vmatpush1.msra.mxu0 %v1453
    %1455 = vmatprep.subr.mxu0 0.0
    %v1456 = vand.u32 %v58, 4294901760
    %1457 = vmatpush1.msra.mxu0 %v1456
    %1458 = vmatprep.subr.mxu0 0.0
    %v1459 = vand.u32 %v57, 4294901760
    %1460 = vmatpush1.msra.mxu0 %v1459
    %1461 = vmatprep.subr.mxu0 0.0
    %v1462 = vand.u32 %v56, 4294901760
    %1463 = vmatpush1.msra.mxu0 %v1462
    %1464 = vmatprep.subr.mxu0 0.0
    %v1465 = vand.u32 %v55, 4294901760
    %1466 = vmatpush1.msra.mxu0 %v1465
    %1467 = vmatprep.subr.mxu0 0.0
    %v1468 = vand.u32 %v54, 4294901760
    %1469 = vmatpush1.msra.mxu0 %v1468
    %1470 = vmatprep.subr.mxu0 0.0
    %v1471 = vand.u32 %v53, 4294901760
    %1472 = vmatpush1.msra.mxu0 %v1471
    %1473 = vmatprep.subr.mxu0 0.0
    %v1474 = vand.u32 %v52, 4294901760
    %1475 = vmatpush1.msra.mxu0 %v1474
    %1476 = vmatprep.subr.mxu0 0.0
    %v1477 = vand.u32 %v83, 4294901760
    %1478 = vmatpush2.msra.mxu0 %v1477
    %1479 = vmatprep.subr.mxu0 0.0
    %v1480 = vand.u32 %v82, 4294901760
    %1481 = vmatpush2.msra.mxu0 %v1480
    %1482 = vmatprep.subr.mxu0 0.0
    %v1483 = vand.u32 %v81, 4294901760
    %1484 = vmatpush2.msra.mxu0 %v1483
    %1485 = vmatprep.subr.mxu0 0.0
    %v1486 = vand.u32 %v80, 4294901760
    %1487 = vmatpush2.msra.mxu0 %v1486
    %1488 = vmatprep.subr.mxu0 0.0
    %v1489 = vand.u32 %v79, 4294901760
    %1490 = vmatpush2.msra.mxu0 %v1489
    %1491 = vmatprep.subr.mxu0 0.0
    %v1492 = vand.u32 %v78, 4294901760
    %1493 = vmatpush2.msra.mxu0 %v1492
    %1494 = vmatprep.subr.mxu0 0.0
    %v1495 = vand.u32 %v77, 4294901760
    %1496 = vmatpush2.msra.mxu0 %v1495
    %1497 = vmatprep.subr.mxu0 0.0
    %v1498 = vand.u32 %v76, 4294901760
    %1499 = vmatpush2.msra.mxu0 %v1498
    %1500 = vmatprep.subr.mxu0 0.0
    %v1501 = vand.u32 %v75, 4294901760
    %1502 = vmatpush2.msra.mxu0 %v1501
    %1503 = vmatprep.subr.mxu0 0.0
    %v1504 = vand.u32 %v74, 4294901760
    %1505 = vmatpush2.msra.mxu0 %v1504
    %1506 = vmatprep.subr.mxu0 0.0
    %v1507 = vand.u32 %v73, 4294901760
    %1508 = vmatpush2.msra.mxu0 %v1507
    %1509 = vmatprep.subr.mxu0 0.0
    %v1510 = vand.u32 %v72, 4294901760
    %1511 = vmatpush2.msra.mxu0 %v1510
    %1512 = vmatprep.subr.mxu0 0.0
    %v1513 = vand.u32 %v71, 4294901760
    %1514 = vmatpush2.msra.mxu0 %v1513
    %1515 = vmatprep.subr.mxu0 0.0
    %v1516 = vand.u32 %v70, 4294901760
    %1517 = vmatpush2.msra.mxu0 %v1516
    %1518 = vmatprep.subr.mxu0 0.0
    %v1519 = vand.u32 %v69, 4294901760
    %1520 = vmatpush2.msra.mxu0 %v1519
    %1521 = vmatprep.subr.mxu0 0.0
    %v1522 = vand.u32 %v68, 4294901760
    %1523 = vmatpush2.msra.mxu0 %v1522
    %v1524 = vand.u32 %v19, 4294901760
    %v1525 = vsub.f32 %v19, %v1524
    %v1526 = vand.u32 %v1525, 4294901760
    %1527 = vmatprep.mubr.f32.mxu0 %v1526
    %v1528 = vand.u32 %v18, 4294901760
    %v1529 = vsub.f32 %v18, %v1528
    %v1530 = vand.u32 %v1529, 4294901760
    %1531 = vmatmul.mubr.f32.gmra.mxu0 %v1530
    %v1532 = vpop.f32.mrf.mxu0
    %v1533 = vadd.f32 %v1425, %v1532
    %v1534 = vpop.f32.mrf.mxu0
    %1535 = vdwg.mxu0
    %1536 = vmatprep.subr.mxu0 0.0
    %v1537 = vand.u32 %v67, 4294901760
    %v1538 = vsub.f32 %v67, %v1537
    %v1539 = vand.u32 %v1538, 4294901760
    %1540 = vmatpush1.msra.mxu0 %v1539
    %1541 = vmatprep.subr.mxu0 0.0
    %v1542 = vand.u32 %v66, 4294901760
    %v1543 = vsub.f32 %v66, %v1542
    %v1544 = vand.u32 %v1543, 4294901760
    %1545 = vmatpush1.msra.mxu0 %v1544
    %1546 = vmatprep.subr.mxu0 0.0
    %v1547 = vand.u32 %v65, 4294901760
    %v1548 = vsub.f32 %v65, %v1547
    %v1549 = vand.u32 %v1548, 4294901760
    %1550 = vmatpush1.msra.mxu0 %v1549
    %1551 = vmatprep.subr.mxu0 0.0
    %v1552 = vand.u32 %v64, 4294901760
    %v1553 = vsub.f32 %v64, %v1552
    %v1554 = vand.u32 %v1553, 4294901760
    %1555 = vmatpush1.msra.mxu0 %v1554
    %1556 = vmatprep.subr.mxu0 0.0
    %v1557 = vand.u32 %v63, 4294901760
    %v1558 = vsub.f32 %v63, %v1557
    %v1559 = vand.u32 %v1558, 4294901760
    %1560 = vmatpush1.msra.mxu0 %v1559
    %1561 = vmatprep.subr.mxu0 0.0
    %v1562 = vand.u32 %v62, 4294901760
    %v1563 = vsub.f32 %v62, %v1562
    %v1564 = vand.u32 %v1563, 4294901760
    %1565 = vmatpush1.msra.mxu0 %v1564
    %1566 = vmatprep.subr.mxu0 0.0
    %v1567 = vand.u32 %v61, 4294901760
    %v1568 = vsub.f32 %v61, %v1567
    %v1569 = vand.u32 %v1568, 4294901760
    %1570 = vmatpush1.msra.mxu0 %v1569
    %1571 = vmatprep.subr.mxu0 0.0
    %v1572 = vand.u32 %v60, 4294901760
    %v1573 = vsub.f32 %v60, %v1572
    %v1574 = vand.u32 %v1573, 4294901760
    %1575 = vmatpush1.msra.mxu0 %v1574
    %1576 = vmatprep.subr.mxu0 0.0
    %v1577 = vand.u32 %v59, 4294901760
    %v1578 = vsub.f32 %v59, %v1577
    %v1579 = vand.u32 %v1578, 4294901760
    %1580 = vmatpush1.msra.mxu0 %v1579
    %1581 = vmatprep.subr.mxu0 0.0
    %v1582 = vand.u32 %v58, 4294901760
    %v1583 = vsub.f32 %v58, %v1582
    %v1584 = vand.u32 %v1583, 4294901760
    %1585 = vmatpush1.msra.mxu0 %v1584
    %1586 = vmatprep.subr.mxu0 0.0
    %v1587 = vand.u32 %v57, 4294901760
    %v1588 = vsub.f32 %v57, %v1587
    %v1589 = vand.u32 %v1588, 4294901760
    %1590 = vmatpush1.msra.mxu0 %v1589
    %1591 = vmatprep.subr.mxu0 0.0
    %v1592 = vand.u32 %v56, 4294901760
    %v1593 = vsub.f32 %v56, %v1592
    %v1594 = vand.u32 %v1593, 4294901760
    %1595 = vmatpush1.msra.mxu0 %v1594
    %1596 = vmatprep.subr.mxu0 0.0
    %v1597 = vand.u32 %v55, 4294901760
    %v1598 = vsub.f32 %v55, %v1597
    %v1599 = vand.u32 %v1598, 4294901760
    %1600 = vmatpush1.msra.mxu0 %v1599
    %1601 = vmatprep.subr.mxu0 0.0
    %v1602 = vand.u32 %v54, 4294901760
    %v1603 = vsub.f32 %v54, %v1602
    %v1604 = vand.u32 %v1603, 4294901760
    %1605 = vmatpush1.msra.mxu0 %v1604
    %1606 = vmatprep.subr.mxu0 0.0
    %v1607 = vand.u32 %v53, 4294901760
    %v1608 = vsub.f32 %v53, %v1607
    %v1609 = vand.u32 %v1608, 4294901760
    %1610 = vmatpush1.msra.mxu0 %v1609
    %1611 = vmatprep.subr.mxu0 0.0
    %v1612 = vand.u32 %v52, 4294901760
    %v1613 = vsub.f32 %v52, %v1612
    %v1614 = vand.u32 %v1613, 4294901760
    %1615 = vmatpush1.msra.mxu0 %v1614
    %1616 = vmatprep.subr.mxu0 0.0
    %v1617 = vand.u32 %v83, 4294901760
    %v1618 = vsub.f32 %v83, %v1617
    %v1619 = vand.u32 %v1618, 4294901760
    %1620 = vmatpush2.msra.mxu0 %v1619
    %1621 = vmatprep.subr.mxu0 0.0
    %v1622 = vand.u32 %v82, 4294901760
    %v1623 = vsub.f32 %v82, %v1622
    %v1624 = vand.u32 %v1623, 4294901760
    %1625 = vmatpush2.msra.mxu0 %v1624
    %1626 = vmatprep.subr.mxu0 0.0
    %v1627 = vand.u32 %v81, 4294901760
    %v1628 = vsub.f32 %v81, %v1627
    %v1629 = vand.u32 %v1628, 4294901760
    %1630 = vmatpush2.msra.mxu0 %v1629
    %1631 = vmatprep.subr.mxu0 0.0
    %v1632 = vand.u32 %v80, 4294901760
    %v1633 = vsub.f32 %v80, %v1632
    %v1634 = vand.u32 %v1633, 4294901760
    %1635 = vmatpush2.msra.mxu0 %v1634
    %1636 = vmatprep.subr.mxu0 0.0
    %v1637 = vand.u32 %v79, 4294901760
    %v1638 = vsub.f32 %v79, %v1637
    %v1639 = vand.u32 %v1638, 4294901760
    %1640 = vmatpush2.msra.mxu0 %v1639
    %1641 = vmatprep.subr.mxu0 0.0
    %v1642 = vand.u32 %v78, 4294901760
    %v1643 = vsub.f32 %v78, %v1642
    %v1644 = vand.u32 %v1643, 4294901760
    %1645 = vmatpush2.msra.mxu0 %v1644
    %1646 = vmatprep.subr.mxu0 0.0
    %v1647 = vand.u32 %v77, 4294901760
    %v1648 = vsub.f32 %v77, %v1647
    %v1649 = vand.u32 %v1648, 4294901760
    %1650 = vmatpush2.msra.mxu0 %v1649
    %1651 = vmatprep.subr.mxu0 0.0
    %v1652 = vand.u32 %v76, 4294901760
    %v1653 = vsub.f32 %v76, %v1652
    %v1654 = vand.u32 %v1653, 4294901760
    %1655 = vmatpush2.msra.mxu0 %v1654
    %1656 = vmatprep.subr.mxu0 0.0
    %v1657 = vand.u32 %v75, 4294901760
    %v1658 = vsub.f32 %v75, %v1657
    %v1659 = vand.u32 %v1658, 4294901760
    %1660 = vmatpush2.msra.mxu0 %v1659
    %1661 = vmatprep.subr.mxu0 0.0
    %v1662 = vand.u32 %v74, 4294901760
    %v1663 = vsub.f32 %v74, %v1662
    %v1664 = vand.u32 %v1663, 4294901760
    %1665 = vmatpush2.msra.mxu0 %v1664
    %1666 = vmatprep.subr.mxu0 0.0
    %v1667 = vand.u32 %v73, 4294901760
    %v1668 = vsub.f32 %v73, %v1667
    %v1669 = vand.u32 %v1668, 4294901760
    %1670 = vmatpush2.msra.mxu0 %v1669
    %1671 = vmatprep.subr.mxu0 0.0
    %v1672 = vand.u32 %v72, 4294901760
    %v1673 = vsub.f32 %v72, %v1672
    %v1674 = vand.u32 %v1673, 4294901760
    %1675 = vmatpush2.msra.mxu0 %v1674
    %1676 = vmatprep.subr.mxu0 0.0
    %v1677 = vand.u32 %v71, 4294901760
    %v1678 = vsub.f32 %v71, %v1677
    %v1679 = vand.u32 %v1678, 4294901760
    %1680 = vmatpush2.msra.mxu0 %v1679
    %1681 = vmatprep.subr.mxu0 0.0
    %v1682 = vand.u32 %v70, 4294901760
    %v1683 = vsub.f32 %v70, %v1682
    %v1684 = vand.u32 %v1683, 4294901760
    %1685 = vmatpush2.msra.mxu0 %v1684
    %1686 = vmatprep.subr.mxu0 0.0
    %v1687 = vand.u32 %v69, 4294901760
    %v1688 = vsub.f32 %v69, %v1687
    %v1689 = vand.u32 %v1688, 4294901760
    %1690 = vmatpush2.msra.mxu0 %v1689
    %1691 = vmatprep.subr.mxu0 0.0
    %v1692 = vand.u32 %v68, 4294901760
    %v1693 = vsub.f32 %v68, %v1692
    %v1694 = vand.u32 %v1693, 4294901760
    %1695 = vmatpush2.msra.mxu0 %v1694
    %v1696 = vand.u32 %v19, 4294901760
    %1697 = vmatprep.mubr.f32.mxu0 %v1696
    %v1698 = vand.u32 %v18, 4294901760
    %1699 = vmatmul.mubr.f32.gmra.mxu0 %v1698
    %v1700 = vpop.f32.mrf.mxu0
    %v1701 = vadd.f32 %v1533, %v1700
    %v1702 = vpop.f32.mrf.mxu0
    %1703 = vdwg.mxu0
    %1704 = vmatprep.subr.mxu0 0.0
    %v1705 = vand.u32 %v67, 4294901760
    %1706 = vmatpush1.msra.mxu0 %v1705
    %1707 = vmatprep.subr.mxu0 0.0
    %v1708 = vand.u32 %v66, 4294901760
    %1709 = vmatpush1.msra.mxu0 %v1708
    %1710 = vmatprep.subr.mxu0 0.0
    %v1711 = vand.u32 %v65, 4294901760
    %1712 = vmatpush1.msra.mxu0 %v1711
    %1713 = vmatprep.subr.mxu0 0.0
    %v1714 = vand.u32 %v64, 4294901760
    %1715 = vmatpush1.msra.mxu0 %v1714
    %1716 = vmatprep.subr.mxu0 0.0
    %v1717 = vand.u32 %v63, 4294901760
    %1718 = vmatpush1.msra.mxu0 %v1717
    %1719 = vmatprep.subr.mxu0 0.0
    %v1720 = vand.u32 %v62, 4294901760
    %1721 = vmatpush1.msra.mxu0 %v1720
    %1722 = vmatprep.subr.mxu0 0.0
    %v1723 = vand.u32 %v61, 4294901760
    %1724 = vmatpush1.msra.mxu0 %v1723
    %1725 = vmatprep.subr.mxu0 0.0
    %v1726 = vand.u32 %v60, 4294901760
    %1727 = vmatpush1.msra.mxu0 %v1726
    %1728 = vmatprep.subr.mxu0 0.0
    %v1729 = vand.u32 %v59, 4294901760
    %1730 = vmatpush1.msra.mxu0 %v1729
    %1731 = vmatprep.subr.mxu0 0.0
    %v1732 = vand.u32 %v58, 4294901760
    %1733 = vmatpush1.msra.mxu0 %v1732
    %1734 = vmatprep.subr.mxu0 0.0
    %v1735 = vand.u32 %v57, 4294901760
    %1736 = vmatpush1.msra.mxu0 %v1735
    %1737 = vmatprep.subr.mxu0 0.0
    %v1738 = vand.u32 %v56, 4294901760
    %1739 = vmatpush1.msra.mxu0 %v1738
    %1740 = vmatprep.subr.mxu0 0.0
    %v1741 = vand.u32 %v55, 4294901760
    %1742 = vmatpush1.msra.mxu0 %v1741
    %1743 = vmatprep.subr.mxu0 0.0
    %v1744 = vand.u32 %v54, 4294901760
    %1745 = vmatpush1.msra.mxu0 %v1744
    %1746 = vmatprep.subr.mxu0 0.0
    %v1747 = vand.u32 %v53, 4294901760
    %1748 = vmatpush1.msra.mxu0 %v1747
    %1749 = vmatprep.subr.mxu0 0.0
    %v1750 = vand.u32 %v52, 4294901760
    %1751 = vmatpush1.msra.mxu0 %v1750
    %1752 = vmatprep.subr.mxu0 0.0
    %v1753 = vand.u32 %v83, 4294901760
    %1754 = vmatpush2.msra.mxu0 %v1753
    %1755 = vmatprep.subr.mxu0 0.0
    %v1756 = vand.u32 %v82, 4294901760
    %1757 = vmatpush2.msra.mxu0 %v1756
    %1758 = vmatprep.subr.mxu0 0.0
    %v1759 = vand.u32 %v81, 4294901760
    %1760 = vmatpush2.msra.mxu0 %v1759
    %1761 = vmatprep.subr.mxu0 0.0
    %v1762 = vand.u32 %v80, 4294901760
    %1763 = vmatpush2.msra.mxu0 %v1762
    %1764 = vmatprep.subr.mxu0 0.0
    %v1765 = vand.u32 %v79, 4294901760
    %1766 = vmatpush2.msra.mxu0 %v1765
    %1767 = vmatprep.subr.mxu0 0.0
    %v1768 = vand.u32 %v78, 4294901760
    %1769 = vmatpush2.msra.mxu0 %v1768
    %1770 = vmatprep.subr.mxu0 0.0
    %v1771 = vand.u32 %v77, 4294901760
    %1772 = vmatpush2.msra.mxu0 %v1771
    %1773 = vmatprep.subr.mxu0 0.0
    %v1774 = vand.u32 %v76, 4294901760
    %1775 = vmatpush2.msra.mxu0 %v1774
    %1776 = vmatprep.subr.mxu0 0.0
    %v1777 = vand.u32 %v75, 4294901760
    %1778 = vmatpush2.msra.mxu0 %v1777
    %1779 = vmatprep.subr.mxu0 0.0
    %v1780 = vand.u32 %v74, 4294901760
    %1781 = vmatpush2.msra.mxu0 %v1780
    %1782 = vmatprep.subr.mxu0 0.0
    %v1783 = vand.u32 %v73, 4294901760
    %1784 = vmatpush2.msra.mxu0 %v1783
    %1785 = vmatprep.subr.mxu0 0.0
    %v1786 = vand.u32 %v72, 4294901760
    %1787 = vmatpush2.msra.mxu0 %v1786
    %1788 = vmatprep.subr.mxu0 0.0
    %v1789 = vand.u32 %v71, 4294901760
    %1790 = vmatpush2.msra.mxu0 %v1789
    %1791 = vmatprep.subr.mxu0 0.0
    %v1792 = vand.u32 %v70, 4294901760
    %1793 = vmatpush2.msra.mxu0 %v1792
    %1794 = vmatprep.subr.mxu0 0.0
    %v1795 = vand.u32 %v69, 4294901760
    %1796 = vmatpush2.msra.mxu0 %v1795
    %1797 = vmatprep.subr.mxu0 0.0
    %v1798 = vand.u32 %v68, 4294901760
    %1799 = vmatpush2.msra.mxu0 %v1798
    %v1800 = vand.u32 %v19, 4294901760
    %1801 = vmatprep.mubr.f32.mxu0 %v1800
    %v1802 = vand.u32 %v18, 4294901760
    %1803 = vmatmul.mubr.f32.gmra.mxu0 %v1802
    %v1804 = vpop.f32.mrf.mxu0
    %v1805 = vadd.f32 %v1701, %v1804
    %v1806 = vpop.f32.mrf.mxu0
    %1807 = vdwg.mxu0
    %v1808 = vmul.f32 %v1805, 0.03125
    %vm1809 = vcmask 130048
    %1810 = vst.msk [vmem:[#allocation2] sm:$0xff] %vm1809, %v1808
    // Predicated region
    $region10: #{tpu_custom_call.1} parent=1 // pred_check
      _
    $region11: #{tpu_custom_call.1} parent=1 // pred_check_branch
      %1812 = sbr.rel (0) target = $region13
    $region12: #{tpu_custom_call.1} parent=1 // pred_region
      %s1814 = ssub.s32 128, 128
      %1815 = vsyncadd [#allocation3], %s1814
      %s1817 = sshll.u32 [#allocation2], 4
      %s1818 = int_to_ptr.vmem [resolvable:$true] %s1817
      %1820 = dma.vmem_to_hbm [thread:$0]  %s1818, 128, %s2, [#allocation3]
    $region13: #{tpu_custom_call.1} parent=1 // pred_fallthru
      _
    // Predicated region
    $region14: #{tpu_custom_call.1} parent=1 // pred_check
      _
    $region15: #{tpu_custom_call.1} parent=1 // pred_check_branch
      %1822 = sbr.rel (0) target = $region17
    $region16: #{tpu_custom_call.1} parent=1 // pred_region
      %1823 = dma.done [#allocation3], 128
    $region17: #{tpu_custom_call.1} parent=1 // pred_fallthru
      _
    %1824 = vsyncpa [#allocation3], 1

</llo_original>
